<compile_context>
chip_gen: v5e
topology: v5e:2x2
jax: 0.10.0
libtpu: 0.0.40
codegen_flags: <defaults>
</compile_context>

<pallas_src>
import functools

import numpy as np
import jax
import jax.numpy as jnp
from jax.experimental import pallas as pl
from jax.experimental.pallas import tpu as pltpu


def _round_up(x, m):
    return ((x + m - 1) // m) * m


def _pick_tw(w, c):
    """Number of W slabs per block: target ~1024 matmul rows, TW | W, rows % 8 == 0."""
    cap = max(1, 1024 // max(c, 1))
    if w <= cap:
        return w
    for d in range(min(w, cap), 0, -1):
        if w % d == 0 and (d * c) % 8 == 0:
            return d
    return w


def _global_filter_kernel(x_ref, wr_ref, wi_ref, f2_ref, f1_ref, g2_ref,
                          y_ref, fq_ref, piv1_ref, piv2_ref, *, tw, c, p):
    """One block = TW columns (w) of one batch element.

    Shapes (P = padded Nh):
      x_ref  : (1, TW*C, H)        rows ordered (w, c), cols = h
      wr/wi  : (C, TW*P)           rows = c, cols ordered (w, h')
      f2_ref : (H, 2P)             [Re F2^T | Im F2^T], zero padded
      f1_ref : (2C, 2C)            [[F1r, -F1i], [F1i, F1r]]
      g2_ref : (2P, H)             [Re G2^T ; -Im G2^T] with Hermitian fold
      y_ref  : (1, TW*C, H)
      fq_ref : (1, 2C, TW*P)       top C rows = Im(freq), bottom C rows = Re(freq)
      piv1   : (2C, TW*P) scratch, piv2: (TW*C, 2P) scratch
    """
    def dot(a, b):
        # DEFAULT precision (single MXU pass), f32 accumulation.
        return jnp.dot(a, b, preferred_element_type=jnp.float32)

    x2 = x_ref[0]                                   # (TW*C, H) real

    # ---- forward rfft along H: [Re | Im] in a single matmul -----------------
    m = dot(x2, f2_ref[...])                        # (TW*C, 2P)

    # ---- pivot 1: rows (w, c) -> vertical complex rep (rows [Re_c; Im_c],
    #      cols (w, h')).  Aligned static slice copies through VMEM scratch.
    for w in range(tw):
        piv1_ref[0:c,     w * p:(w + 1) * p] = m[w * c:(w + 1) * c, 0:p]
        piv1_ref[c:2 * c, w * p:(w + 1) * p] = m[w * c:(w + 1) * c, p:2 * p]

    # ---- forward DFT along C (complex, fused block matmul) ------------------
    a2 = dot(f1_ref[...], piv1_ref[...])            # (2C, TW*P)
    ar = a2[0:c, :]                                 # Re(rfft2(x))
    ai = a2[c:2 * c, :]                             # Im(rfft2(x))

    # ---- complex filter multiply -------------------------------------------
    # Stored with Im on TOP and Re on BOTTOM so the very same F1 block matrix
    # performs the conjugate (inverse) C-transform in the next matmul.
    wr = wr_ref[...]
    wi = wi_ref[...]
    fq_ref[0, 0:c, :] = ar * wi + ai * wr           # Im(Frequency_dom)
    fq_ref[0, c:2 * c, :] = ar * wr - ai * wi       # Re(Frequency_dom)

    # ---- inverse DFT along C: F1blk @ [Fi; Fr] = [Im(G1 F); Re(G1 F)] -------
    d = dot(f1_ref[...], fq_ref[0])                 # (2C, TW*P)

    # ---- pivot 2: back to rows (w, c), cols [Re | Im] over h' ---------------
    for w in range(tw):
        piv2_ref[w * c:(w + 1) * c, 0:p] = d[c:2 * c, w * p:(w + 1) * p]   # Re
        piv2_ref[w * c:(w + 1) * c, p:2 * p] = d[0:c, w * p:(w + 1) * p]   # Im

    # ---- inverse rfft along H (Hermitian fold baked into g2), real output ---
    y_ref[0] = dot(piv2_ref[...], g2_ref[...])      # (TW*C, H)


def _make_filter_mats(n, p):
    """Fused, ortho-normalized DFT block matrices (frequency axis padded to p)."""
    idx = np.arange(n)
    nh = n // 2 + 1
    f = np.exp(-2j * np.pi * np.outer(idx, idx) / n) / np.sqrt(n)   # forward DFT

    # H-axis forward rfft, applied from the right:  x @ [Re F2^T | Im F2^T]
    f2cat = np.zeros((n, 2 * p), np.float32)
    f2cat[:, :nh] = f[:, :nh].real
    f2cat[:, p:p + nh] = f[:, :nh].imag

    # C-axis forward DFT (and, via a Re/Im swap, its conjugate inverse)
    f1blk = np.block([[f.real, -f.imag],
                      [f.imag, f.real]]).astype(np.float32)         # (2n, 2n)

    # H-axis inverse rfft with Hermitian fold, applied from the right:
    #   y = Re(D) @ Re(G2^T) - Im(D) @ Im(G2^T)
    fold = np.full((nh, 1), 2.0)
    fold[0, 0] = 1.0
    if n % 2 == 0:
        fold[-1, 0] = 1.0
    g2t = fold * np.exp(+2j * np.pi * np.outer(idx[:nh], idx) / n) / np.sqrt(n)
    g2cat = np.zeros((2 * p, n), np.float32)
    g2cat[:nh, :] = g2t.real
    g2cat[p:p + nh, :] = -g2t.imag

    return jnp.asarray(f2cat), jnp.asarray(f1blk), jnp.asarray(g2cat)


def global_filter_forward(x, complex_weight):
    """x: (B, C, H, W) float32; complex_weight: (C, H//2+1, W, 2) float32.
    Returns (y, Frequency_dom) matching the PyTorch module."""
    B, C, H, W = x.shape
    assert C == H == W, "GlobalFilter is only shape-consistent for C == H == W"
    N = C
    Nh = N // 2 + 1
    assert complex_weight.shape == (N, Nh, N, 2)

    P = _round_up(Nh, 128)           # lane-dense padded frequency axis
    TW = _pick_tw(W, N)              # W slabs per grid step
    f2cat, f1blk, g2cat = _make_filter_mats(N, P)

    # Input: (B, C, H, W) -> (B, W, C, H) -> (B, W*C, H)  (one HBM transpose,
    # the trailing reshape is free).  Rows within a W-tile are (w, c), cols h.
    xt = jnp.transpose(x, (0, 3, 1, 2)).reshape(B, W * C, H)

    # Weight: (C, Nh, W, 2) -> pad freq axis to P -> (C, W, P) -> (C, W*P),
    # matching the kernel's (c rows, (w, h') cols) layout. Padding cols are 0.
    wpad = jnp.pad(complex_weight, ((0, 0), (0, P - Nh), (0, 0), (0, 0)))
    wr = jnp.transpose(wpad[..., 0], (0, 2, 1)).reshape(C, W * P)
    wi = jnp.transpose(wpad[..., 1], (0, 2, 1)).reshape(C, W * P)

    kernel = functools.partial(_global_filter_kernel, tw=TW, c=C, p=P)
    const = lambda shape: pl.BlockSpec(shape, lambda b, t: (0, 0))

    y2, fq = pl.pallas_call(
        kernel,
        out_shape=(
            jax.ShapeDtypeStruct((B, W * C, H), jnp.float32),
            jax.ShapeDtypeStruct((B, 2 * C, W * P), jnp.float32),
        ),
        grid=(B, W // TW),
        in_specs=[
            pl.BlockSpec((1, TW * C, H), lambda b, t: (b, t, 0)),     # x slab
            pl.BlockSpec((C, TW * P), lambda b, t: (0, t)),           # weight Re
            pl.BlockSpec((C, TW * P), lambda b, t: (0, t)),           # weight Im
            const((N, 2 * P)),                                        # F2 fused
            const((2 * N, 2 * N)),                                    # F1 block
            const((2 * P, N)),                                        # G2 fused
        ],
        out_specs=(
            pl.BlockSpec((1, TW * C, H), lambda b, t: (b, t, 0)),     # y
            pl.BlockSpec((1, 2 * C, TW * P), lambda b, t: (b, 0, t)), # freq (Im;Re)
        ),
        scratch_shapes=[
            pltpu.VMEM((2 * C, TW * P), jnp.float32),                 # pivot 1
            pltpu.VMEM((TW * C, 2 * P), jnp.float32),                 # pivot 2
        ],
        compiler_params=pltpu.CompilerParams(
            dimension_semantics=("parallel", "parallel"),
            vmem_limit_bytes=48 * 1024 * 1024,
        ),
    )(xt, wr, wi, f2cat, f1blk, g2cat)

    # y: (B, W*C, H) -> (B, W, C, H) -> (B, C, H, W)
    y = jnp.transpose(y2.reshape(B, W, C, H), (0, 2, 3, 1))

    # freq: (B, 2C, W*P) -> (B, 2C, W, Nh); top C rows = Im, bottom C = Re.
    fq4 = fq.reshape(B, 2 * C, W, P)[..., :Nh]
    freq = (fq4[:, C:] + 1j * fq4[:, :C]).astype(jnp.complex64)       # (B, C, W, Nh)
    freq = jnp.transpose(freq, (0, 1, 3, 2))                          # (B, C, Nh, W)
    return y, freq


if __name__ == "__main__":
    B, N = 2, 8
    in_channel = out_channle = dim = N        # module is shape-consistent when equal
    Nh = out_channle // 2 + 1

    key = jax.random.PRNGKey(0)
    kx, kw = jax.random.split(key)
    x = jax.random.normal(kx, (B, in_channel, out_channle, dim), jnp.float32)
    # nn.Parameter(torch.randn(H, W, dim, 2) * 0.02), initialized deterministically:
    complex_weight = 0.02 * jax.random.normal(kw, (in_channel, Nh, dim, 2), jnp.float32)

    y, freq = global_filter_forward(x, complex_weight)
    jax.block_until_ready((y, freq))

    # reference in plain JAX (mirrors the torch forward exactly)
    wc = complex_weight[..., 0] + 1j * complex_weight[..., 1]
    xf = jnp.fft.rfft2(x, axes=(1, 2), norm="ortho")
    freq_ref = xf * wc
    y_ref = jnp.fft.irfft2(freq_ref, s=(out_channle, dim), axes=(1, 2), norm="ortho")

    # DEFAULT matmul precision (single bf16 MXU pass) -> slightly looser tolerance
    np.testing.assert_allclose(np.asarray(y), np.asarray(y_ref), rtol=1e-2, atol=1e-3)
    np.testing.assert_allclose(np.asarray(freq), np.asarray(freq_ref), rtol=1e-2, atol=1e-3)

    print("KERNEL_OK")
</pallas_src>

<mosaic_0001>
module attributes {stable_mosaic.version = 11 : i64} {
  func.func @_global_filter_kernel(%arg0: i32, %arg1: i32, %arg2: memref<1x64x8xf32, #tpu.memory_space<vmem>>, %arg3: memref<8x1024xf32, #tpu.memory_space<vmem>>, %arg4: memref<8x1024xf32, #tpu.memory_space<vmem>>, %arg5: memref<8x256xf32, #tpu.memory_space<vmem>>, %arg6: memref<16x16xf32, #tpu.memory_space<vmem>>, %arg7: memref<256x8xf32, #tpu.memory_space<vmem>>, %arg8: memref<1x64x8xf32, #tpu.memory_space<vmem>>, %arg9: memref<1x16x1024xf32, #tpu.memory_space<vmem>>, %arg10: memref<16x1024xf32, #tpu.memory_space<vmem>>, %arg11: memref<64x256xf32, #tpu.memory_space<vmem>>) attributes {dimension_semantics = [#tpu.dimension_semantics<parallel>, #tpu.dimension_semantics<parallel>], iteration_bounds = array<i64: 2, 1>, scalar_prefetch = 0 : i64, scratch_operands = 2 : i64, tpu.core_type = #tpu.core_type<tc>, window_params = [{transform_indices = @transform_0, window_bounds = array<i64: 1, 64, 8>}, {transform_indices = @transform_1, window_bounds = array<i64: 8, 1024>}, {transform_indices = @transform_2, window_bounds = array<i64: 8, 1024>}, {pipeline_mode = #tpu.pipeline_mode<synchronous>, transform_indices = @transform_3, window_bounds = array<i64: 8, 256>}, {pipeline_mode = #tpu.pipeline_mode<synchronous>, transform_indices = @transform_4, window_bounds = array<i64: 16, 16>}, {pipeline_mode = #tpu.pipeline_mode<synchronous>, transform_indices = @transform_5, window_bounds = array<i64: 256, 8>}, {transform_indices = @transform_6, window_bounds = array<i64: 1, 64, 8>}, {transform_indices = @transform_7, window_bounds = array<i64: 1, 16, 1024>}]} {
    %c0 = arith.constant 0 : index
    %c0_0 = arith.constant 0 : index
    %c0_1 = arith.constant 0 : index
    %0 = vector.load %arg2[%c0, %c0_0, %c0_1] : memref<1x64x8xf32, #tpu.memory_space<vmem>>, vector<1x64x8xf32>
    %1 = vector.shape_cast %0 : vector<1x64x8xf32> to vector<64x8xf32>
    %c0_2 = arith.constant 0 : index
    %c0_3 = arith.constant 0 : index
    %2 = vector.load %arg5[%c0_2, %c0_3] : memref<8x256xf32, #tpu.memory_space<vmem>>, vector<8x256xf32>
    %cst = arith.constant dense<0.000000e+00> : vector<64x256xf32>
    %3 = tpu.matmul %1, %2, %cst {dimension_numbers = #tpu.dot_dimension_numbers<[1], [0], [0], [1], [0, 0, 1, 1], [], []>} : vector<64x8xf32>, vector<8x256xf32>, vector<64x256xf32> -> vector<64x256xf32>
    %4 = vector.extract_strided_slice %3 {offsets = [0, 0], sizes = [8, 128], strides = [1, 1]} : vector<64x256xf32> to vector<8x128xf32>
    %c0_4 = arith.constant 0 : index
    %c0_5 = arith.constant 0 : index
    %5 = vector.load %arg10[%c0_4, %c0_5] : memref<16x1024xf32, #tpu.memory_space<vmem>>, vector<8x128xf32>
    tpu.vector_store %arg10[%c0_4, %c0_5], %4 {strides = array<i32>} : memref<16x1024xf32, #tpu.memory_space<vmem>>, vector<8x128xf32>,
    %6 = vector.extract_strided_slice %3 {offsets = [0, 128], sizes = [8, 128], strides = [1, 1]} : vector<64x256xf32> to vector<8x128xf32>
    %c8 = arith.constant 8 : index
    %c0_6 = arith.constant 0 : index
    %7 = vector.load %arg10[%c8, %c0_6] : memref<16x1024xf32, #tpu.memory_space<vmem>>, vector<8x128xf32>
    tpu.vector_store %arg10[%c8, %c0_6], %6 {strides = array<i32>} : memref<16x1024xf32, #tpu.memory_space<vmem>>, vector<8x128xf32>,
    %8 = vector.extract_strided_slice %3 {offsets = [8, 0], sizes = [8, 128], strides = [1, 1]} : vector<64x256xf32> to vector<8x128xf32>
    %c0_7 = arith.constant 0 : index
    %c128 = arith.constant 128 : index
    %9 = vector.load %arg10[%c0_7, %c128] : memref<16x1024xf32, #tpu.memory_space<vmem>>, vector<8x128xf32>
    tpu.vector_store %arg10[%c0_7, %c128], %8 {strides = array<i32>} : memref<16x1024xf32, #tpu.memory_space<vmem>>, vector<8x128xf32>,
    %10 = vector.extract_strided_slice %3 {offsets = [8, 128], sizes = [8, 128], strides = [1, 1]} : vector<64x256xf32> to vector<8x128xf32>
    %c8_8 = arith.constant 8 : index
    %c128_9 = arith.constant 128 : index
    %11 = vector.load %arg10[%c8_8, %c128_9] : memref<16x1024xf32, #tpu.memory_space<vmem>>, vector<8x128xf32>
    tpu.vector_store %arg10[%c8_8, %c128_9], %10 {strides = array<i32>} : memref<16x1024xf32, #tpu.memory_space<vmem>>, vector<8x128xf32>,
    %12 = vector.extract_strided_slice %3 {offsets = [16, 0], sizes = [8, 128], strides = [1, 1]} : vector<64x256xf32> to vector<8x128xf32>
    %c0_10 = arith.constant 0 : index
    %c256 = arith.constant 256 : index
    %13 = vector.load %arg10[%c0_10, %c256] : memref<16x1024xf32, #tpu.memory_space<vmem>>, vector<8x128xf32>
    tpu.vector_store %arg10[%c0_10, %c256], %12 {strides = array<i32>} : memref<16x1024xf32, #tpu.memory_space<vmem>>, vector<8x128xf32>,
    %14 = vector.extract_strided_slice %3 {offsets = [16, 128], sizes = [8, 128], strides = [1, 1]} : vector<64x256xf32> to vector<8x128xf32>
    %c8_11 = arith.constant 8 : index
    %c256_12 = arith.constant 256 : index
    %15 = vector.load %arg10[%c8_11, %c256_12] : memref<16x1024xf32, #tpu.memory_space<vmem>>, vector<8x128xf32>
    tpu.vector_store %arg10[%c8_11, %c256_12], %14 {strides = array<i32>} : memref<16x1024xf32, #tpu.memory_space<vmem>>, vector<8x128xf32>,
    %16 = vector.extract_strided_slice %3 {offsets = [24, 0], sizes = [8, 128], strides = [1, 1]} : vector<64x256xf32> to vector<8x128xf32>
    %c0_13 = arith.constant 0 : index
    %c384 = arith.constant 384 : index
    %17 = vector.load %arg10[%c0_13, %c384] : memref<16x1024xf32, #tpu.memory_space<vmem>>, vector<8x128xf32>
    tpu.vector_store %arg10[%c0_13, %c384], %16 {strides = array<i32>} : memref<16x1024xf32, #tpu.memory_space<vmem>>, vector<8x128xf32>,
    %18 = vector.extract_strided_slice %3 {offsets = [24, 128], sizes = [8, 128], strides = [1, 1]} : vector<64x256xf32> to vector<8x128xf32>
    %c8_14 = arith.constant 8 : index
    %c384_15 = arith.constant 384 : index
    %19 = vector.load %arg10[%c8_14, %c384_15] : memref<16x1024xf32, #tpu.memory_space<vmem>>, vector<8x128xf32>
    tpu.vector_store %arg10[%c8_14, %c384_15], %18 {strides = array<i32>} : memref<16x1024xf32, #tpu.memory_space<vmem>>, vector<8x128xf32>,
    %20 = vector.extract_strided_slice %3 {offsets = [32, 0], sizes = [8, 128], strides = [1, 1]} : vector<64x256xf32> to vector<8x128xf32>
    %c0_16 = arith.constant 0 : index
    %c512 = arith.constant 512 : index
    %21 = vector.load %arg10[%c0_16, %c512] : memref<16x1024xf32, #tpu.memory_space<vmem>>, vector<8x128xf32>
    tpu.vector_store %arg10[%c0_16, %c512], %20 {strides = array<i32>} : memref<16x1024xf32, #tpu.memory_space<vmem>>, vector<8x128xf32>,
    %22 = vector.extract_strided_slice %3 {offsets = [32, 128], sizes = [8, 128], strides = [1, 1]} : vector<64x256xf32> to vector<8x128xf32>
    %c8_17 = arith.constant 8 : index
    %c512_18 = arith.constant 512 : index
    %23 = vector.load %arg10[%c8_17, %c512_18] : memref<16x1024xf32, #tpu.memory_space<vmem>>, vector<8x128xf32>
    tpu.vector_store %arg10[%c8_17, %c512_18], %22 {strides = array<i32>} : memref<16x1024xf32, #tpu.memory_space<vmem>>, vector<8x128xf32>,
    %24 = vector.extract_strided_slice %3 {offsets = [40, 0], sizes = [8, 128], strides = [1, 1]} : vector<64x256xf32> to vector<8x128xf32>
    %c0_19 = arith.constant 0 : index
    %c640 = arith.constant 640 : index
    %25 = vector.load %arg10[%c0_19, %c640] : memref<16x1024xf32, #tpu.memory_space<vmem>>, vector<8x128xf32>
    tpu.vector_store %arg10[%c0_19, %c640], %24 {strides = array<i32>} : memref<16x1024xf32, #tpu.memory_space<vmem>>, vector<8x128xf32>,
    %26 = vector.extract_strided_slice %3 {offsets = [40, 128], sizes = [8, 128], strides = [1, 1]} : vector<64x256xf32> to vector<8x128xf32>
    %c8_20 = arith.constant 8 : index
    %c640_21 = arith.constant 640 : index
    %27 = vector.load %arg10[%c8_20, %c640_21] : memref<16x1024xf32, #tpu.memory_space<vmem>>, vector<8x128xf32>
    tpu.vector_store %arg10[%c8_20, %c640_21], %26 {strides = array<i32>} : memref<16x1024xf32, #tpu.memory_space<vmem>>, vector<8x128xf32>,
    %28 = vector.extract_strided_slice %3 {offsets = [48, 0], sizes = [8, 128], strides = [1, 1]} : vector<64x256xf32> to vector<8x128xf32>
    %c0_22 = arith.constant 0 : index
    %c768 = arith.constant 768 : index
    %29 = vector.load %arg10[%c0_22, %c768] : memref<16x1024xf32, #tpu.memory_space<vmem>>, vector<8x128xf32>
    tpu.vector_store %arg10[%c0_22, %c768], %28 {strides = array<i32>} : memref<16x1024xf32, #tpu.memory_space<vmem>>, vector<8x128xf32>,
    %30 = vector.extract_strided_slice %3 {offsets = [48, 128], sizes = [8, 128], strides = [1, 1]} : vector<64x256xf32> to vector<8x128xf32>
    %c8_23 = arith.constant 8 : index
    %c768_24 = arith.constant 768 : index
    %31 = vector.load %arg10[%c8_23, %c768_24] : memref<16x1024xf32, #tpu.memory_space<vmem>>, vector<8x128xf32>
    tpu.vector_store %arg10[%c8_23, %c768_24], %30 {strides = array<i32>} : memref<16x1024xf32, #tpu.memory_space<vmem>>, vector<8x128xf32>,
    %32 = vector.extract_strided_slice %3 {offsets = [56, 0], sizes = [8, 128], strides = [1, 1]} : vector<64x256xf32> to vector<8x128xf32>
    %c0_25 = arith.constant 0 : index
    %c896 = arith.constant 896 : index
    %33 = vector.load %arg10[%c0_25, %c896] : memref<16x1024xf32, #tpu.memory_space<vmem>>, vector<8x128xf32>
    tpu.vector_store %arg10[%c0_25, %c896], %32 {strides = array<i32>} : memref<16x1024xf32, #tpu.memory_space<vmem>>, vector<8x128xf32>,
    %34 = vector.extract_strided_slice %3 {offsets = [56, 128], sizes = [8, 128], strides = [1, 1]} : vector<64x256xf32> to vector<8x128xf32>
    %c8_26 = arith.constant 8 : index
    %c896_27 = arith.constant 896 : index
    %35 = vector.load %arg10[%c8_26, %c896_27] : memref<16x1024xf32, #tpu.memory_space<vmem>>, vector<8x128xf32>
    tpu.vector_store %arg10[%c8_26, %c896_27], %34 {strides = array<i32>} : memref<16x1024xf32, #tpu.memory_space<vmem>>, vector<8x128xf32>,
    %c0_28 = arith.constant 0 : index
    %c0_29 = arith.constant 0 : index
    %36 = vector.load %arg6[%c0_28, %c0_29] : memref<16x16xf32, #tpu.memory_space<vmem>>, vector<16x16xf32>
    %c0_30 = arith.constant 0 : index
    %c0_31 = arith.constant 0 : index
    %37 = vector.load %arg10[%c0_30, %c0_31] : memref<16x1024xf32, #tpu.memory_space<vmem>>, vector<16x1024xf32>
    %cst_32 = arith.constant dense<0.000000e+00> : vector<16x1024xf32>
    %38 = tpu.matmul %36, %37, %cst_32 {dimension_numbers = #tpu.dot_dimension_numbers<[1], [0], [0], [1], [0, 0, 1, 1], [], []>} : vector<16x16xf32>, vector<16x1024xf32>, vector<16x1024xf32> -> vector<16x1024xf32>
    %39 = vector.extract_strided_slice %38 {offsets = [0, 0], sizes = [8, 1024], strides = [1, 1]} : vector<16x1024xf32> to vector<8x1024xf32>
    %40 = vector.extract_strided_slice %38 {offsets = [8, 0], sizes = [8, 1024], strides = [1, 1]} : vector<16x1024xf32> to vector<8x1024xf32>
    %c0_33 = arith.constant 0 : index
    %c0_34 = arith.constant 0 : index
    %41 = vector.load %arg3[%c0_33, %c0_34] : memref<8x1024xf32, #tpu.memory_space<vmem>>, vector<8x1024xf32>
    %c0_35 = arith.constant 0 : index
    %c0_36 = arith.constant 0 : index
    %42 = vector.load %arg4[%c0_35, %c0_36] : memref<8x1024xf32, #tpu.memory_space<vmem>>, vector<8x1024xf32>
    %43 = arith.mulf %39, %42 : vector<8x1024xf32>
    %44 = arith.mulf %40, %41 : vector<8x1024xf32>
    %45 = arith.addf %43, %44 : vector<8x1024xf32>
    %c0_37 = arith.constant 0 : index
    %c0_38 = arith.constant 0 : index
    %c0_39 = arith.constant 0 : index
    %46 = vector.load %arg9[%c0_37, %c0_38, %c0_39] : memref<1x16x1024xf32, #tpu.memory_space<vmem>>, vector<1x8x1024xf32>
    %47 = vector.shape_cast %46 : vector<1x8x1024xf32> to vector<8x1024xf32>
    %48 = vector.shape_cast %45 : vector<8x1024xf32> to vector<1x8x1024xf32>
    tpu.vector_store %arg9[%c0_37, %c0_38, %c0_39], %48 {strides = array<i32>} : memref<1x16x1024xf32, #tpu.memory_space<vmem>>, vector<1x8x1024xf32>,
    %49 = arith.mulf %39, %41 : vector<8x1024xf32>
    %50 = arith.mulf %40, %42 : vector<8x1024xf32>
    %51 = arith.subf %49, %50 : vector<8x1024xf32>
    %c0_40 = arith.constant 0 : index
    %c8_41 = arith.constant 8 : index
    %c0_42 = arith.constant 0 : index
    %52 = vector.load %arg9[%c0_40, %c8_41, %c0_42] : memref<1x16x1024xf32, #tpu.memory_space<vmem>>, vector<1x8x1024xf32>
    %53 = vector.shape_cast %52 : vector<1x8x1024xf32> to vector<8x1024xf32>
    %54 = vector.shape_cast %51 : vector<8x1024xf32> to vector<1x8x1024xf32>
    tpu.vector_store %arg9[%c0_40, %c8_41, %c0_42], %54 {strides = array<i32>} : memref<1x16x1024xf32, #tpu.memory_space<vmem>>, vector<1x8x1024xf32>,
    %c0_43 = arith.constant 0 : index
    %c0_44 = arith.constant 0 : index
    %55 = vector.load %arg6[%c0_43, %c0_44] : memref<16x16xf32, #tpu.memory_space<vmem>>, vector<16x16xf32>
    %c0_45 = arith.constant 0 : index
    %c0_46 = arith.constant 0 : index
    %c0_47 = arith.constant 0 : index
    %56 = vector.load %arg9[%c0_45, %c0_46, %c0_47] : memref<1x16x1024xf32, #tpu.memory_space<vmem>>, vector<1x16x1024xf32>
    %57 = vector.shape_cast %56 : vector<1x16x1024xf32> to vector<16x1024xf32>
    %cst_48 = arith.constant dense<0.000000e+00> : vector<16x1024xf32>
    %58 = tpu.matmul %55, %57, %cst_48 {dimension_numbers = #tpu.dot_dimension_numbers<[1], [0], [0], [1], [0, 0, 1, 1], [], []>} : vector<16x16xf32>, vector<16x1024xf32>, vector<16x1024xf32> -> vector<16x1024xf32>
    %59 = vector.extract_strided_slice %58 {offsets = [8, 0], sizes = [8, 128], strides = [1, 1]} : vector<16x1024xf32> to vector<8x128xf32>
    %c0_49 = arith.constant 0 : index
    %c0_50 = arith.constant 0 : index
    %60 = vector.load %arg11[%c0_49, %c0_50] : memref<64x256xf32, #tpu.memory_space<vmem>>, vector<8x128xf32>
    tpu.vector_store %arg11[%c0_49, %c0_50], %59 {strides = array<i32>} : memref<64x256xf32, #tpu.memory_space<vmem>>, vector<8x128xf32>,
    %61 = vector.extract_strided_slice %58 {offsets = [0, 0], sizes = [8, 128], strides = [1, 1]} : vector<16x1024xf32> to vector<8x128xf32>
    %c0_51 = arith.constant 0 : index
    %c128_52 = arith.constant 128 : index
    %62 = vector.load %arg11[%c0_51, %c128_52] : memref<64x256xf32, #tpu.memory_space<vmem>>, vector<8x128xf32>
    tpu.vector_store %arg11[%c0_51, %c128_52], %61 {strides = array<i32>} : memref<64x256xf32, #tpu.memory_space<vmem>>, vector<8x128xf32>,
    %63 = vector.extract_strided_slice %58 {offsets = [8, 128], sizes = [8, 128], strides = [1, 1]} : vector<16x1024xf32> to vector<8x128xf32>
    %c8_53 = arith.constant 8 : index
    %c0_54 = arith.constant 0 : index
    %64 = vector.load %arg11[%c8_53, %c0_54] : memref<64x256xf32, #tpu.memory_space<vmem>>, vector<8x128xf32>
    tpu.vector_store %arg11[%c8_53, %c0_54], %63 {strides = array<i32>} : memref<64x256xf32, #tpu.memory_space<vmem>>, vector<8x128xf32>,
    %65 = vector.extract_strided_slice %58 {offsets = [0, 128], sizes = [8, 128], strides = [1, 1]} : vector<16x1024xf32> to vector<8x128xf32>
    %c8_55 = arith.constant 8 : index
    %c128_56 = arith.constant 128 : index
    %66 = vector.load %arg11[%c8_55, %c128_56] : memref<64x256xf32, #tpu.memory_space<vmem>>, vector<8x128xf32>
    tpu.vector_store %arg11[%c8_55, %c128_56], %65 {strides = array<i32>} : memref<64x256xf32, #tpu.memory_space<vmem>>, vector<8x128xf32>,
    %67 = vector.extract_strided_slice %58 {offsets = [8, 256], sizes = [8, 128], strides = [1, 1]} : vector<16x1024xf32> to vector<8x128xf32>
    %c16 = arith.constant 16 : index
    %c0_57 = arith.constant 0 : index
    %68 = vector.load %arg11[%c16, %c0_57] : memref<64x256xf32, #tpu.memory_space<vmem>>, vector<8x128xf32>
    tpu.vector_store %arg11[%c16, %c0_57], %67 {strides = array<i32>} : memref<64x256xf32, #tpu.memory_space<vmem>>, vector<8x128xf32>,
    %69 = vector.extract_strided_slice %58 {offsets = [0, 256], sizes = [8, 128], strides = [1, 1]} : vector<16x1024xf32> to vector<8x128xf32>
    %c16_58 = arith.constant 16 : index
    %c128_59 = arith.constant 128 : index
    %70 = vector.load %arg11[%c16_58, %c128_59] : memref<64x256xf32, #tpu.memory_space<vmem>>, vector<8x128xf32>
    tpu.vector_store %arg11[%c16_58, %c128_59], %69 {strides = array<i32>} : memref<64x256xf32, #tpu.memory_space<vmem>>, vector<8x128xf32>,
    %71 = vector.extract_strided_slice %58 {offsets = [8, 384], sizes = [8, 128], strides = [1, 1]} : vector<16x1024xf32> to vector<8x128xf32>
    %c24 = arith.constant 24 : index
    %c0_60 = arith.constant 0 : index
    %72 = vector.load %arg11[%c24, %c0_60] : memref<64x256xf32, #tpu.memory_space<vmem>>, vector<8x128xf32>
    tpu.vector_store %arg11[%c24, %c0_60], %71 {strides = array<i32>} : memref<64x256xf32, #tpu.memory_space<vmem>>, vector<8x128xf32>,
    %73 = vector.extract_strided_slice %58 {offsets = [0, 384], sizes = [8, 128], strides = [1, 1]} : vector<16x1024xf32> to vector<8x128xf32>
    %c24_61 = arith.constant 24 : index
    %c128_62 = arith.constant 128 : index
    %74 = vector.load %arg11[%c24_61, %c128_62] : memref<64x256xf32, #tpu.memory_space<vmem>>, vector<8x128xf32>
    tpu.vector_store %arg11[%c24_61, %c128_62], %73 {strides = array<i32>} : memref<64x256xf32, #tpu.memory_space<vmem>>, vector<8x128xf32>,
    %75 = vector.extract_strided_slice %58 {offsets = [8, 512], sizes = [8, 128], strides = [1, 1]} : vector<16x1024xf32> to vector<8x128xf32>
    %c32 = arith.constant 32 : index
    %c0_63 = arith.constant 0 : index
    %76 = vector.load %arg11[%c32, %c0_63] : memref<64x256xf32, #tpu.memory_space<vmem>>, vector<8x128xf32>
    tpu.vector_store %arg11[%c32, %c0_63], %75 {strides = array<i32>} : memref<64x256xf32, #tpu.memory_space<vmem>>, vector<8x128xf32>,
    %77 = vector.extract_strided_slice %58 {offsets = [0, 512], sizes = [8, 128], strides = [1, 1]} : vector<16x1024xf32> to vector<8x128xf32>
    %c32_64 = arith.constant 32 : index
    %c128_65 = arith.constant 128 : index
    %78 = vector.load %arg11[%c32_64, %c128_65] : memref<64x256xf32, #tpu.memory_space<vmem>>, vector<8x128xf32>
    tpu.vector_store %arg11[%c32_64, %c128_65], %77 {strides = array<i32>} : memref<64x256xf32, #tpu.memory_space<vmem>>, vector<8x128xf32>,
    %79 = vector.extract_strided_slice %58 {offsets = [8, 640], sizes = [8, 128], strides = [1, 1]} : vector<16x1024xf32> to vector<8x128xf32>
    %c40 = arith.constant 40 : index
    %c0_66 = arith.constant 0 : index
    %80 = vector.load %arg11[%c40, %c0_66] : memref<64x256xf32, #tpu.memory_space<vmem>>, vector<8x128xf32>
    tpu.vector_store %arg11[%c40, %c0_66], %79 {strides = array<i32>} : memref<64x256xf32, #tpu.memory_space<vmem>>, vector<8x128xf32>,
    %81 = vector.extract_strided_slice %58 {offsets = [0, 640], sizes = [8, 128], strides = [1, 1]} : vector<16x1024xf32> to vector<8x128xf32>
    %c40_67 = arith.constant 40 : index
    %c128_68 = arith.constant 128 : index
    %82 = vector.load %arg11[%c40_67, %c128_68] : memref<64x256xf32, #tpu.memory_space<vmem>>, vector<8x128xf32>
    tpu.vector_store %arg11[%c40_67, %c128_68], %81 {strides = array<i32>} : memref<64x256xf32, #tpu.memory_space<vmem>>, vector<8x128xf32>,
    %83 = vector.extract_strided_slice %58 {offsets = [8, 768], sizes = [8, 128], strides = [1, 1]} : vector<16x1024xf32> to vector<8x128xf32>
    %c48 = arith.constant 48 : index
    %c0_69 = arith.constant 0 : index
    %84 = vector.load %arg11[%c48, %c0_69] : memref<64x256xf32, #tpu.memory_space<vmem>>, vector<8x128xf32>
    tpu.vector_store %arg11[%c48, %c0_69], %83 {strides = array<i32>} : memref<64x256xf32, #tpu.memory_space<vmem>>, vector<8x128xf32>,
    %85 = vector.extract_strided_slice %58 {offsets = [0, 768], sizes = [8, 128], strides = [1, 1]} : vector<16x1024xf32> to vector<8x128xf32>
    %c48_70 = arith.constant 48 : index
    %c128_71 = arith.constant 128 : index
    %86 = vector.load %arg11[%c48_70, %c128_71] : memref<64x256xf32, #tpu.memory_space<vmem>>, vector<8x128xf32>
    tpu.vector_store %arg11[%c48_70, %c128_71], %85 {strides = array<i32>} : memref<64x256xf32, #tpu.memory_space<vmem>>, vector<8x128xf32>,
    %87 = vector.extract_strided_slice %58 {offsets = [8, 896], sizes = [8, 128], strides = [1, 1]} : vector<16x1024xf32> to vector<8x128xf32>
    %c56 = arith.constant 56 : index
    %c0_72 = arith.constant 0 : index
    %88 = vector.load %arg11[%c56, %c0_72] : memref<64x256xf32, #tpu.memory_space<vmem>>, vector<8x128xf32>
    tpu.vector_store %arg11[%c56, %c0_72], %87 {strides = array<i32>} : memref<64x256xf32, #tpu.memory_space<vmem>>, vector<8x128xf32>,
    %89 = vector.extract_strided_slice %58 {offsets = [0, 896], sizes = [8, 128], strides = [1, 1]} : vector<16x1024xf32> to vector<8x128xf32>
    %c56_73 = arith.constant 56 : index
    %c128_74 = arith.constant 128 : index
    %90 = vector.load %arg11[%c56_73, %c128_74] : memref<64x256xf32, #tpu.memory_space<vmem>>, vector<8x128xf32>
    tpu.vector_store %arg11[%c56_73, %c128_74], %89 {strides = array<i32>} : memref<64x256xf32, #tpu.memory_space<vmem>>, vector<8x128xf32>,
    %c0_75 = arith.constant 0 : index
    %c0_76 = arith.constant 0 : index
    %91 = vector.load %arg11[%c0_75, %c0_76] : memref<64x256xf32, #tpu.memory_space<vmem>>, vector<64x256xf32>
    %c0_77 = arith.constant 0 : index
    %c0_78 = arith.constant 0 : index
    %92 = vector.load %arg7[%c0_77, %c0_78] : memref<256x8xf32, #tpu.memory_space<vmem>>, vector<256x8xf32>
    %cst_79 = arith.constant dense<0.000000e+00> : vector<64x8xf32>
    %93 = tpu.matmul %91, %92, %cst_79 {dimension_numbers = #tpu.dot_dimension_numbers<[1], [0], [0], [1], [0, 0, 1, 1], [], []>} : vector<64x256xf32>, vector<256x8xf32>, vector<64x8xf32> -> vector<64x8xf32>
    %c0_80 = arith.constant 0 : index
    %c0_81 = arith.constant 0 : index
    %c0_82 = arith.constant 0 : index
    %94 = vector.load %arg8[%c0_80, %c0_81, %c0_82] : memref<1x64x8xf32, #tpu.memory_space<vmem>>, vector<1x64x8xf32>
    %95 = vector.shape_cast %94 : vector<1x64x8xf32> to vector<64x8xf32>
    %96 = vector.shape_cast %93 : vector<64x8xf32> to vector<1x64x8xf32>
    tpu.vector_store %arg8[%c0_80, %c0_81, %c0_82], %96 {strides = array<i32>} : memref<1x64x8xf32, #tpu.memory_space<vmem>>, vector<1x64x8xf32>,
    return
  }
  func.func @transform_0(%arg0: i32, %arg1: i32) -> (i32, i32, i32) {
    %c0_i32 = arith.constant 0 : i32
    %c0_i32_0 = arith.constant 0 : i32
    return %arg0, %arg1, %c0_i32 : i32, i32, i32
  }
  func.func @transform_1(%arg0: i32, %arg1: i32) -> (i32, i32) {
    %c0_i32 = arith.constant 0 : i32
    %c0_i32_0 = arith.constant 0 : i32
    return %c0_i32, %arg1 : i32, i32
  }
  func.func @transform_2(%arg0: i32, %arg1: i32) -> (i32, i32) {
    %c0_i32 = arith.constant 0 : i32
    %c0_i32_0 = arith.constant 0 : i32
    return %c0_i32, %arg1 : i32, i32
  }
  func.func @transform_3(%arg0: i32, %arg1: i32) -> (i32, i32) {
    %c0_i32 = arith.constant 0 : i32
    %c0_i32_0 = arith.constant 0 : i32
    %c0_i32_1 = arith.constant 0 : i32
    return %c0_i32, %c0_i32_0 : i32, i32
  }
  func.func @transform_4(%arg0: i32, %arg1: i32) -> (i32, i32) {
    %c0_i32 = arith.constant 0 : i32
    %c0_i32_0 = arith.constant 0 : i32
    %c0_i32_1 = arith.constant 0 : i32
    return %c0_i32, %c0_i32_0 : i32, i32
  }
  func.func @transform_5(%arg0: i32, %arg1: i32) -> (i32, i32) {
    %c0_i32 = arith.constant 0 : i32
    %c0_i32_0 = arith.constant 0 : i32
    %c0_i32_1 = arith.constant 0 : i32
    return %c0_i32, %c0_i32_0 : i32, i32
  }
  func.func @transform_6(%arg0: i32, %arg1: i32) -> (i32, i32, i32) {
    %c0_i32 = arith.constant 0 : i32
    %c0_i32_0 = arith.constant 0 : i32
    return %arg0, %arg1, %c0_i32 : i32, i32, i32
  }
  func.func @transform_7(%arg0: i32, %arg1: i32) -> (i32, i32, i32) {
    %c0_i32 = arith.constant 0 : i32
    %c0_i32_0 = arith.constant 0 : i32
    return %arg0, %c0_i32, %arg1 : i32, i32, i32
  }
}

</mosaic_0001>

<llo_original>
// kernel: tpu_custom_call.1
$region0: #{tpu_custom_call.1}
  #allocation0 [shape = 'u32[]', space=smem, size = 0x4, offset = 0x4, fixed_abs, tag = 'smem constant byte address 0x4 - core index']
  #allocation1 [shape = 'u32[72,128]{1,0:T(1,128)}', space=vmem, size = 0x9000, scoped, tag = 'internal scratch']
  #allocation2 [shape = 'f32[16,1024]{1,0:T(8,128)}', space=vmem, size = 0x10000, scoped, tag = 'scratch operand']
  #allocation3 [shape = 'f32[64,256]{1,0:T(8,128)}', space=vmem, size = 0x10000, scoped, tag = 'scratch operand']
  %s0 = inlined_call_operand.vmem [shape: f32[2,64,8], index: 0, kind: input, shape index: {}]
  %s1 = inlined_call_operand.vmem [shape: f32[8,1024], index: 1, kind: input, shape index: {}]
  %s2 = inlined_call_operand.vmem [shape: f32[8,1024], index: 2, kind: input, shape index: {}]
  %s3 = inlined_call_operand.vmem [shape: f32[8,256], index: 3, kind: input, shape index: {}]
  %s4 = inlined_call_operand.vmem [shape: f32[16,16], index: 4, kind: input, shape index: {}]
  %s5 = inlined_call_operand.vmem [shape: f32[256,8], index: 5, kind: input, shape index: {}]
  %s6 = inlined_call_operand.vmem [shape: f32[2,64,8], index: 6, kind: output, shape index: {0}]
  %s7 = inlined_call_operand.hbm [shape: f32[2,16,1024], index: 7, kind: output, shape index: {1}]
  %8 = xla_tuple %s6, %s7
  %s9 = sld [smem:[#allocation0]]
  $region65: #{tpu_custom_call.1} parent=0
    _
  %s11 = ssub.s32 1, %s9
  %s12 = scalar_select 0, %s11, %s9
  $region1: #{tpu_custom_call.1} parent=0
    #allocation4 [shape = 'u8[131072]{0}', space=vmem, size = 0x20000, scoped, tag = 'output window, operand 1']
    #allocation5 [shape = 's32[2]{0}', space=sflag, size = 0x8, scoped, tag = 'scoped memory for tpu_custom_call.1']
    %13 = vsyncpa [#allocation5], 0
    %s14 = scalar_lea.sflag [#allocation5], 1
    %15 = vsyncpa %s14, 0
    loop: start=0, step=1, limit=4
    $region2: #{tpu_custom_call.1} parent=1 // loop_pre_header
      _
    $region3: #{tpu_custom_call.1} parent=1 // loop_header
      %s17 = sphi 0, %s21
      %p18 = scmp.ge.s32.totalorder %s17, 4
      %s24 = sphi 0, %s36
      %s25 = sphi 0, %s32
      %s26 = sphi 0, %s24
      %s27 = sphi 0, %s25
      %s28 = sphi 0, %s26
      %s29 = sphi 0, %s27
      %s41 = sphi 0, %s43
      %s44 = sphi 0, %s41
      %s45 = sphi 0, %s44
      %s61 = sphi 0, %s45
      %s67 = sphi 0, %s69
      %s70 = sphi 0, %s67
      %s71 = sphi 0, %s70
      %s87 = sphi 0, %s71
      %s93 = sphi 0, %s95
      %s96 = sphi 0, %s93
      %s97 = sphi 0, %s96
      %s113 = sphi 0, %s97
      %s117 = sphi 0, %s117
      %s119 = sphi 0, %s117
      %s120 = sphi 0, %s119
      %s134 = sphi 0, %s120
      %s138 = sphi 0, %s138
      %s140 = sphi 0, %s138
      %s141 = sphi 0, %s140
      %s155 = sphi 0, %s141
      %s159 = sphi 0, %s159
      %s161 = sphi 0, %s159
      %s162 = sphi 0, %s161
      %s176 = sphi 0, %s162
      %s184 = sphi 0, %s186
      %s187 = sphi 0, %s184
      %s188 = sphi 0, %s187
      %s204 = sphi 0, %s188
      %s212 = sphi 0, %s214
      %s215 = sphi 0, %s212
      %s216 = sphi 0, %s215
      %s232 = sphi 0, %s216
    $region4: #{tpu_custom_call.1} parent=1 // loop_header_branch
      %20 = sbr.rel (%p18) target = $region8
    $region5: #{tpu_custom_call.1} parent=1 // loop_body
      %s22 = ssub.s32 %s17, 1
      %s23 = ssub.s32 %s17, 2
      %s30 = sadd.s32 1, %s25
      %p31 = scmp.ge.s32.totalorder %s30, 1
      %s32 = scalar_select %p31, 0, %s30
      %s33 = sadd.s32 1, %s24
      %s34 = scalar_select %p31, %s33, %s24
      %p35 = scmp.ge.s32.totalorder %s34, 2
      %s36 = scalar_select %p35, 0, %s34
      %s37 = ssub.s32 %s24, %s36
      %s38 = ssub.s32 %s25, %s32
      %s39 = sor.u32 %s37, %s38
      %p40 = scmp.eq.s32.totalorder %s39, 0
      %s42 = sadd.s32 %s41, 1
      %s43 = scalar_select %p40, %s41, %s42
      %p46 = pneg %p40
      %p47 = scmp.eq.s32.totalorder %s17, 1
      %p48 = por %p46, %p47
      %p49 = scmp.ne.s32.totalorder %s41, %s44
      %p50 = scmp.eq.s32.totalorder %s17, 0
      %p51 = por %p49, %p50
      %p52 = scmp.ne.s32.totalorder %s41, %s44
      %p53 = scmp.eq.s32.totalorder %s22, 1
      %p54 = por %p52, %p53
      %p55 = scmp.ne.s32.totalorder %s44, %s45
      %p56 = scmp.eq.s32.totalorder %s22, 0
      %p57 = por %p55, %p56
      %p58 = scmp.ne.s32.totalorder %s44, %s45
      %p59 = scmp.eq.s32.totalorder %s23, 1
      %p60 = por %p58, %p59
      %p62 = scmp.ne.s32.totalorder %s45, %s61
      %p63 = scmp.eq.s32.totalorder %s23, 0
      %p64 = por %p62, %p63
      %s65 = ssub.s32 %s25, %s32
      %p66 = scmp.eq.s32.totalorder %s65, 0
      %s68 = sadd.s32 %s67, 1
      %s69 = scalar_select %p66, %s67, %s68
      %p72 = pneg %p66
      %p73 = scmp.eq.s32.totalorder %s17, 1
      %p74 = por %p72, %p73
      %p75 = scmp.ne.s32.totalorder %s67, %s70
      %p76 = scmp.eq.s32.totalorder %s17, 0
      %p77 = por %p75, %p76
      %p78 = scmp.ne.s32.totalorder %s67, %s70
      %p79 = scmp.eq.s32.totalorder %s22, 1
      %p80 = por %p78, %p79
      %p81 = scmp.ne.s32.totalorder %s70, %s71
      %p82 = scmp.eq.s32.totalorder %s22, 0
      %p83 = por %p81, %p82
      %p84 = scmp.ne.s32.totalorder %s70, %s71
      %p85 = scmp.eq.s32.totalorder %s23, 1
      %p86 = por %p84, %p85
      %p88 = scmp.ne.s32.totalorder %s71, %s87
      %p89 = scmp.eq.s32.totalorder %s23, 0
      %p90 = por %p88, %p89
      %s91 = ssub.s32 %s25, %s32
      %p92 = scmp.eq.s32.totalorder %s91, 0
      %s94 = sadd.s32 %s93, 1
      %s95 = scalar_select %p92, %s93, %s94
      %p98 = pneg %p92
      %p99 = scmp.eq.s32.totalorder %s17, 1
      %p100 = por %p98, %p99
      %p101 = scmp.ne.s32.totalorder %s93, %s96
      %p102 = scmp.eq.s32.totalorder %s17, 0
      %p103 = por %p101, %p102
      %p104 = scmp.ne.s32.totalorder %s93, %s96
      %p105 = scmp.eq.s32.totalorder %s22, 1
      %p106 = por %p104, %p105
      %p107 = scmp.ne.s32.totalorder %s96, %s97
      %p108 = scmp.eq.s32.totalorder %s22, 0
      %p109 = por %p107, %p108
      %p110 = scmp.ne.s32.totalorder %s96, %s97
      %p111 = scmp.eq.s32.totalorder %s23, 1
      %p112 = por %p110, %p111
      %p114 = scmp.ne.s32.totalorder %s97, %s113
      %p115 = scmp.eq.s32.totalorder %s23, 0
      %p116 = por %p114, %p115
      %s118 = sadd.s32 %s117, 1
      %p121 = scmp.eq.s32.totalorder %s17, 1
      %p122 = scmp.ne.s32.totalorder %s117, %s119
      %p123 = scmp.eq.s32.totalorder %s17, 0
      %p124 = por %p122, %p123
      %p125 = scmp.ne.s32.totalorder %s117, %s119
      %p126 = scmp.eq.s32.totalorder %s22, 1
      %p127 = por %p125, %p126
      %p128 = scmp.ne.s32.totalorder %s119, %s120
      %p129 = scmp.eq.s32.totalorder %s22, 0
      %p130 = por %p128, %p129
      %p131 = scmp.ne.s32.totalorder %s119, %s120
      %p132 = scmp.eq.s32.totalorder %s23, 1
      %p133 = por %p131, %p132
      %p135 = scmp.ne.s32.totalorder %s120, %s134
      %p136 = scmp.eq.s32.totalorder %s23, 0
      %p137 = por %p135, %p136
      %s139 = sadd.s32 %s138, 1
      %p142 = scmp.eq.s32.totalorder %s17, 1
      %p143 = scmp.ne.s32.totalorder %s138, %s140
      %p144 = scmp.eq.s32.totalorder %s17, 0
      %p145 = por %p143, %p144
      %p146 = scmp.ne.s32.totalorder %s138, %s140
      %p147 = scmp.eq.s32.totalorder %s22, 1
      %p148 = por %p146, %p147
      %p149 = scmp.ne.s32.totalorder %s140, %s141
      %p150 = scmp.eq.s32.totalorder %s22, 0
      %p151 = por %p149, %p150
      %p152 = scmp.ne.s32.totalorder %s140, %s141
      %p153 = scmp.eq.s32.totalorder %s23, 1
      %p154 = por %p152, %p153
      %p156 = scmp.ne.s32.totalorder %s141, %s155
      %p157 = scmp.eq.s32.totalorder %s23, 0
      %p158 = por %p156, %p157
      %s160 = sadd.s32 %s159, 1
      %p163 = scmp.eq.s32.totalorder %s17, 1
      %p164 = scmp.ne.s32.totalorder %s159, %s161
      %p165 = scmp.eq.s32.totalorder %s17, 0
      %p166 = por %p164, %p165
      %p167 = scmp.ne.s32.totalorder %s159, %s161
      %p168 = scmp.eq.s32.totalorder %s22, 1
      %p169 = por %p167, %p168
      %p170 = scmp.ne.s32.totalorder %s161, %s162
      %p171 = scmp.eq.s32.totalorder %s22, 0
      %p172 = por %p170, %p171
      %p173 = scmp.ne.s32.totalorder %s161, %s162
      %p174 = scmp.eq.s32.totalorder %s23, 1
      %p175 = por %p173, %p174
      %p177 = scmp.ne.s32.totalorder %s162, %s176
      %p178 = scmp.eq.s32.totalorder %s23, 0
      %p179 = por %p177, %p178
      %s180 = ssub.s32 %s24, %s36
      %s181 = ssub.s32 %s25, %s32
      %s182 = sor.u32 %s180, %s181
      %p183 = scmp.eq.s32.totalorder %s182, 0
      %s185 = sadd.s32 %s184, 1
      %s186 = scalar_select %p183, %s184, %s185
      %p189 = pneg %p183
      %p190 = scmp.eq.s32.totalorder %s17, 1
      %p191 = por %p189, %p190
      %p192 = scmp.ne.s32.totalorder %s184, %s187
      %p193 = scmp.eq.s32.totalorder %s17, 0
      %p194 = por %p192, %p193
      %p195 = scmp.ne.s32.totalorder %s184, %s187
      %p196 = scmp.eq.s32.totalorder %s22, 1
      %p197 = por %p195, %p196
      %p198 = scmp.ne.s32.totalorder %s187, %s188
      %p199 = scmp.eq.s32.totalorder %s22, 0
      %p200 = por %p198, %p199
      %p201 = scmp.ne.s32.totalorder %s187, %s188
      %p202 = scmp.eq.s32.totalorder %s23, 1
      %p203 = por %p201, %p202
      %p205 = scmp.ne.s32.totalorder %s188, %s204
      %p206 = scmp.eq.s32.totalorder %s23, 0
      %p207 = por %p205, %p206
      %s208 = ssub.s32 %s24, %s36
      %s209 = ssub.s32 %s25, %s32
      %s210 = sor.u32 %s208, %s209
      %p211 = scmp.eq.s32.totalorder %s210, 0
      %s213 = sadd.s32 %s212, 1
      %s214 = scalar_select %p211, %s212, %s213
      %p217 = pneg %p211
      %p218 = scmp.eq.s32.totalorder %s17, 1
      %p219 = por %p217, %p218
      %p220 = scmp.ne.s32.totalorder %s212, %s215
      %p221 = scmp.eq.s32.totalorder %s17, 0
      %p222 = por %p220, %p221
      %p223 = scmp.ne.s32.totalorder %s212, %s215
      %p224 = scmp.eq.s32.totalorder %s22, 1
      %p225 = por %p223, %p224
      %p226 = scmp.ne.s32.totalorder %s215, %s216
      %p227 = scmp.eq.s32.totalorder %s22, 0
      %p228 = por %p226, %p227
      %p229 = scmp.ne.s32.totalorder %s215, %s216
      %p230 = scmp.eq.s32.totalorder %s23, 1
      %p231 = por %p229, %p230
      %p233 = scmp.ne.s32.totalorder %s216, %s232
      %p234 = scmp.eq.s32.totalorder %s23, 0
      %p235 = por %p233, %p234
      %p236 = scmp.le.s32.totalorder 1, %s17
      %p237 = scmp.lt.s32.totalorder %s17, 3
      %p238 = pnand %p236, %p237
      %p239 = pneg %p238
      // Predicated region
      $region9: #{tpu_custom_call.1} parent=5 // pred_check
        _
      $region10: #{tpu_custom_call.1} parent=5 // pred_check_branch
        %241 = sbr.rel (%p238) target = $region12
      $region11: #{tpu_custom_call.1} parent=5 // pred_region
        %s242 = ssub.s32 %s17, 1
        // Predicated region
        $region13: #{tpu_custom_call.1} parent=11 // pred_check
          %p243 = pneg %p83
        $region14: #{tpu_custom_call.1} parent=11 // pred_check_branch
          %245 = sbr.rel (%p243) target = $region16
        $region15: #{tpu_custom_call.1} parent=11 // pred_region
          %s246 = smul.u32 8, %s27
          %p247 = scmp.lt.s32.totalorder %s246, 7
          %s248 = scalar_select %p247, %s246, 7
          %s249 = smul.addr %s248, 8
          %s250 = scalar_lea.vmem %s1, %s249
          %s251 = smul.u32 8, %s27
        $region16: #{tpu_custom_call.1} parent=11 // pred_fallthru
          _
        // Predicated region
        $region17: #{tpu_custom_call.1} parent=11 // pred_check
          %p252 = pneg %p109
        $region18: #{tpu_custom_call.1} parent=11 // pred_check_branch
          %254 = sbr.rel (%p252) target = $region20
        $region19: #{tpu_custom_call.1} parent=11 // pred_region
          %s255 = smul.u32 8, %s27
          %p256 = scmp.lt.s32.totalorder %s255, 7
          %s257 = scalar_select %p256, %s255, 7
          %s258 = smul.addr %s257, 8
          %s259 = scalar_lea.vmem %s2, %s258
          %s260 = smul.u32 8, %s27
        $region20: #{tpu_custom_call.1} parent=11 // pred_fallthru
          _
        // Predicated region
        $region21: #{tpu_custom_call.1} parent=11 // pred_check
          %p261 = pneg %p130
        $region22: #{tpu_custom_call.1} parent=11 // pred_check_branch
          %263 = sbr.rel (%p261) target = $region24
        $region23: #{tpu_custom_call.1} parent=11 // pred_region
          _
        $region24: #{tpu_custom_call.1} parent=11 // pred_fallthru
          _
        // Predicated region
        $region25: #{tpu_custom_call.1} parent=11 // pred_check
          %p264 = pneg %p151
        $region26: #{tpu_custom_call.1} parent=11 // pred_check_branch
          %266 = sbr.rel (%p264) target = $region28
        $region27: #{tpu_custom_call.1} parent=11 // pred_region
          _
        $region28: #{tpu_custom_call.1} parent=11 // pred_fallthru
          _
        // Predicated region
        $region29: #{tpu_custom_call.1} parent=11 // pred_check
          %p267 = pneg %p172
        $region30: #{tpu_custom_call.1} parent=11 // pred_check_branch
          %269 = sbr.rel (%p267) target = $region32
        $region31: #{tpu_custom_call.1} parent=11 // pred_region
          _
        $region32: #{tpu_custom_call.1} parent=11 // pred_fallthru
          _
      $region12: #{tpu_custom_call.1} parent=5 // pred_fallthru
        _
      %p270 = scmp.lt.s32.totalorder %s17, 2
      // Predicated region
      $region33: #{tpu_custom_call.1} parent=5 // pred_check
        %p271 = pneg %p270
      $region34: #{tpu_custom_call.1} parent=5 // pred_check_branch
        %273 = sbr.rel (%p271) target = $region36
      $region35: #{tpu_custom_call.1} parent=5 // pred_region
        // Predicated region
        $region37: #{tpu_custom_call.1} parent=35 // pred_check
          %p274 = pneg %p51
        $region38: #{tpu_custom_call.1} parent=35 // pred_check_branch
          %276 = sbr.rel (%p274) target = $region40
        $region39: #{tpu_custom_call.1} parent=35 // pred_region
          %s277 = smul.u32 8, %s25
          %p278 = scmp.lt.s32.totalorder %s24, 1
          %s279 = scalar_select %p278, %s24, 1
          %p280 = scmp.lt.s32.totalorder %s277, 7
          %s281 = scalar_select %p280, %s277, 7
          %s282 = smul.addr %s279, 8
          %s283 = sadd.s32 %s281, %s282
          %s284 = smul.addr %s283, 8
          %s285 = scalar_lea.vmem %s0, %s284
          %s286 = smul.u32 8, %s25
        $region40: #{tpu_custom_call.1} parent=35 // pred_fallthru
          _
      $region36: #{tpu_custom_call.1} parent=5 // pred_fallthru
        _
      %p287 = scmp.le.s32.totalorder 1, %s17
      %p288 = scmp.lt.s32.totalorder %s17, 3
      %p289 = pnand %p287, %p288
      %p290 = pneg %p289
      // Predicated region
      $region41: #{tpu_custom_call.1} parent=5 // pred_check
        _
      $region42: #{tpu_custom_call.1} parent=5 // pred_check_branch
        %292 = sbr.rel (%p289) target = $region44
      $region43: #{tpu_custom_call.1} parent=5 // pred_region
        %s293 = ssub.s32 %s17, 1
        %s294 = smul.u32 8, %s27
        %p295 = scmp.lt.s32.totalorder %s26, 1
        %s296 = scalar_select %p295, %s26, 1
        %p297 = scmp.lt.s32.totalorder %s294, 7
        %s298 = scalar_select %p297, %s294, 7
        %s299 = smul.addr %s296, 8
        %s300 = sadd.s32 %s298, %s299
        %s301 = smul.addr %s300, 8
        %s302 = scalar_lea.vmem %s0, %s301
        %p303 = pneg %p57
        %p304 = pneg %p54
        %s305 = smul.u32 8, %s27
        %p306 = scmp.lt.s32.totalorder %s305, 7
        %s307 = scalar_select %p306, %s305, 7
        %s308 = smul.addr %s307, 8
        %s309 = scalar_lea.vmem %s1, %s308
        %p310 = pneg %p83
        %p311 = pneg %p80
        %s312 = smul.u32 8, %s27
        %p313 = scmp.lt.s32.totalorder %s312, 7
        %s314 = scalar_select %p313, %s312, 7
        %s315 = smul.addr %s314, 8
        %s316 = scalar_lea.vmem %s2, %s315
        %p317 = pneg %p109
        %p318 = pneg %p106
        %p319 = pneg %p130
        %p320 = pneg %p127
        %p321 = pneg %p151
        %p322 = pneg %p148
        %p323 = pneg %p172
        %p324 = pneg %p169
        %p325 = pneg %p200
        %p326 = pneg %p197
        %s327 = smul.u32 8, %s27
        %p328 = scmp.lt.s32.totalorder %s26, 1
        %s329 = scalar_select %p328, %s26, 1
        %p330 = scmp.lt.s32.totalorder %s327, 7
        %s331 = scalar_select %p330, %s327, 7
        %s332 = smul.addr %s329, 8
        %s333 = sadd.s32 %s331, %s332
        %s334 = smul.addr %s333, 8
        %s335 = scalar_lea.vmem %s6, %s334
        %p336 = pneg %p228
        %p337 = pneg %p225
        %s338 = sand.u32 %s215, 1
        %s339 = scalar_lea.sflag [#allocation5], %s338
        %s340 = sand.u32 %s215, 1
        %s341 = smul.addr %s340, 128
        %s342 = scalar_lea.vmem [#allocation4], %s341
        %s343 = smul.u32 8, %s27
        %p344 = scmp.lt.s32.totalorder %s26, 1
        %s345 = scalar_select %p344, %s26, 1
        %p346 = scmp.lt.s32.totalorder %s343, 7
        %s347 = scalar_select %p346, %s343, 7
        %s348 = smul.addr %s345, 8
        %s349 = sadd.s32 %s347, %s348
        %s350 = smul.addr %s349, 8
        %s351 = scalar_lea.vmem %s0, %s350
        %s352 = smul.u32 8, %s27
        %s353 = smul.u32 8, %s27
        %p354 = scmp.lt.s32.totalorder %s353, 7
        %s355 = scalar_select %p354, %s353, 7
        %s356 = smul.addr %s355, 8
        %s357 = scalar_lea.vmem %s1, %s356
        %s358 = smul.u32 8, %s27
        %s359 = smul.u32 8, %s27
        %p360 = scmp.lt.s32.totalorder %s359, 7
        %s361 = scalar_select %p360, %s359, 7
        %s362 = smul.addr %s361, 8
        %s363 = scalar_lea.vmem %s2, %s362
        %s364 = smul.u32 8, %s27
        %s365 = smul.u32 8, %s27
        %p366 = scmp.lt.s32.totalorder %s26, 1
        %s367 = scalar_select %p366, %s26, 1
        %p368 = scmp.lt.s32.totalorder %s365, 7
        %s369 = scalar_select %p368, %s365, 7
        %s370 = smul.addr %s367, 8
        %s371 = sadd.s32 %s369, %s370
        %s372 = smul.addr %s371, 8
        %s373 = scalar_lea.vmem %s6, %s372
        %s374 = smul.u32 8, %s27
        %s375 = smul.u32 8, %s27
        %v376 = vld [vmem:[%s351] sm:$0xff]
        %v377 = vld [vmem:[%s351 + $0x8] sm:$0xff]
        %v378 = vld [vmem:[%s351 + $0x10] sm:$0xff]
        %v379 = vld [vmem:[%s351 + $0x18] sm:$0xff]
        %v380 = vld [vmem:[%s351 + $0x20] sm:$0xff]
        %v381 = vld [vmem:[%s351 + $0x28] sm:$0xff]
        %v382 = vld [vmem:[%s351 + $0x30] sm:$0xff]
        %v383 = vld [vmem:[%s351 + $0x38] sm:$0xff]
        %v384 = vld [vmem:[%s3] sm:$0xff]
        %v385 = vld [vmem:[%s3 + $0x8] sm:$0xff]
        %vm386 = vcmask 64512
        %v388 = vsel %vm386, %v376, 0
        %v391 = vsel %vm386, %v377, 0
        %v394 = vsel %vm386, %v378, 0
        %v397 = vsel %vm386, %v379, 0
        %v400 = vsel %vm386, %v380, 0
        %v403 = vsel %vm386, %v381, 0
        %v406 = vsel %vm386, %v382, 0
        %v409 = vsel %vm386, %v383, 0
        %411 = vmatpush.msra.mxu0 0.0
        %412 = vmatpush.msra.mxu0 0.0
        %413 = vmatpush.msra.mxu0 0.0
        %414 = vmatpush.msra.mxu0 0.0
        %415 = vmatpush.msra.mxu0 0.0
        %416 = vmatpush.msra.mxu0 0.0
        %417 = vmatpush.msra.mxu0 0.0
        %418 = vmatpush.msra.mxu0 0.0
        %419 = vmatpush.msra.mxu0 0.0
        %420 = vmatpush.msra.mxu0 0.0
        %421 = vmatpush.msra.mxu0 0.0
        %422 = vmatpush.msra.mxu0 0.0
        %423 = vmatpush.msra.mxu0 0.0
        %424 = vmatpush.msra.mxu0 0.0
        %425 = vmatpush.msra.mxu0 0.0
        %426 = vmatpush.msra.mxu0 %v384
        %427 = vmatmul.f32.gmra.mxu0 %v388
        %v428 = vpop.f32.mrf.mxu0
        %v429 = vadd.f32 0.0, %v428
        %430 = vmatmul.f32.gmra.mxu0 %v391
        %v431 = vpop.f32.mrf.mxu0
        %v432 = vadd.f32 0.0, %v431
        %433 = vmatmul.f32.gmra.mxu0 %v394
        %v434 = vpop.f32.mrf.mxu0
        %v435 = vadd.f32 0.0, %v434
        %436 = vmatmul.f32.gmra.mxu0 %v397
        %v437 = vpop.f32.mrf.mxu0
        %v438 = vadd.f32 0.0, %v437
        %439 = vmatmul.f32.gmra.mxu0 %v400
        %v440 = vpop.f32.mrf.mxu0
        %v441 = vadd.f32 0.0, %v440
        %442 = vmatmul.f32.gmra.mxu0 %v403
        %v443 = vpop.f32.mrf.mxu0
        %v444 = vadd.f32 0.0, %v443
        %445 = vmatmul.f32.gmra.mxu0 %v406
        %v446 = vpop.f32.mrf.mxu0
        %v447 = vadd.f32 0.0, %v446
        %448 = vmatmul.f32.gmra.mxu0 %v409
        %v449 = vpop.f32.mrf.mxu0
        %v450 = vadd.f32 0.0, %v449
        %451 = vdwg.mxu0
        %452 = vmatpush.msra.mxu0 0.0
        %453 = vmatpush.msra.mxu0 0.0
        %454 = vmatpush.msra.mxu0 0.0
        %455 = vmatpush.msra.mxu0 0.0
        %456 = vmatpush.msra.mxu0 0.0
        %457 = vmatpush.msra.mxu0 0.0
        %458 = vmatpush.msra.mxu0 0.0
        %459 = vmatpush.msra.mxu0 0.0
        %460 = vmatpush.msra.mxu0 0.0
        %461 = vmatpush.msra.mxu0 0.0
        %462 = vmatpush.msra.mxu0 0.0
        %463 = vmatpush.msra.mxu0 0.0
        %464 = vmatpush.msra.mxu0 0.0
        %465 = vmatpush.msra.mxu0 0.0
        %466 = vmatpush.msra.mxu0 0.0
        %467 = vmatpush.msra.mxu0 %v385
        %468 = vmatmul.f32.gmra.mxu0 %v388
        %v469 = vpop.f32.mrf.mxu0
        %v470 = vadd.f32 0.0, %v469
        %471 = vmatmul.f32.gmra.mxu0 %v391
        %v472 = vpop.f32.mrf.mxu0
        %v473 = vadd.f32 0.0, %v472
        %474 = vmatmul.f32.gmra.mxu0 %v394
        %v475 = vpop.f32.mrf.mxu0
        %v476 = vadd.f32 0.0, %v475
        %477 = vmatmul.f32.gmra.mxu0 %v397
        %v478 = vpop.f32.mrf.mxu0
        %v479 = vadd.f32 0.0, %v478
        %480 = vmatmul.f32.gmra.mxu0 %v400
        %v481 = vpop.f32.mrf.mxu0
        %v482 = vadd.f32 0.0, %v481
        %483 = vmatmul.f32.gmra.mxu0 %v403
        %v484 = vpop.f32.mrf.mxu0
        %v485 = vadd.f32 0.0, %v484
        %486 = vmatmul.f32.gmra.mxu0 %v406
        %v487 = vpop.f32.mrf.mxu0
        %v488 = vadd.f32 0.0, %v487
        %489 = vmatmul.f32.gmra.mxu0 %v409
        %v490 = vpop.f32.mrf.mxu0
        %v491 = vadd.f32 0.0, %v490
        %492 = vdwg.mxu0
        %493 = vst [vmem:[#allocation2] sm:$0xff] %v429
        %494 = vst [vmem:[#allocation2 + $0x40] sm:$0xff] %v470
        %495 = vst [vmem:[#allocation2 + $0x8] sm:$0xff] %v432
        %496 = vst [vmem:[#allocation2 + $0x48] sm:$0xff] %v473
        %497 = vst [vmem:[#allocation2 + $0x10] sm:$0xff] %v435
        %498 = vst [vmem:[#allocation2 + $0x50] sm:$0xff] %v476
        %499 = vst [vmem:[#allocation2 + $0x18] sm:$0xff] %v438
        %500 = vst [vmem:[#allocation2 + $0x58] sm:$0xff] %v479
        %501 = vst [vmem:[#allocation2 + $0x20] sm:$0xff] %v441
        %502 = vst [vmem:[#allocation2 + $0x60] sm:$0xff] %v482
        %503 = vst [vmem:[#allocation2 + $0x28] sm:$0xff] %v444
        %504 = vst [vmem:[#allocation2 + $0x68] sm:$0xff] %v485
        %505 = vst [vmem:[#allocation2 + $0x30] sm:$0xff] %v447
        %506 = vst [vmem:[#allocation2 + $0x70] sm:$0xff] %v488
        %507 = vst [vmem:[#allocation2 + $0x38] sm:$0xff] %v450
        %508 = vst [vmem:[#allocation2 + $0x78] sm:$0xff] %v491
        %v509 = vld [vmem:[%s4] sm:$0xff]
        %v510 = vld [vmem:[%s4 + $0x8] sm:$0xff]
        %v511 = vld [vmem:[#allocation2] sm:$0xff]
        %v512 = vld [vmem:[#allocation2 + $0x8] sm:$0xff]
        %v513 = vld [vmem:[#allocation2 + $0x10] sm:$0xff]
        %v514 = vld [vmem:[#allocation2 + $0x18] sm:$0xff]
        %v515 = vld [vmem:[#allocation2 + $0x20] sm:$0xff]
        %v516 = vld [vmem:[#allocation2 + $0x28] sm:$0xff]
        %v517 = vld [vmem:[#allocation2 + $0x30] sm:$0xff]
        %v518 = vld [vmem:[#allocation2 + $0x38] sm:$0xff]
        %v519 = vld [vmem:[#allocation2 + $0x40] sm:$0xff]
        %v520 = vld [vmem:[#allocation2 + $0x48] sm:$0xff]
        %v521 = vld [vmem:[#allocation2 + $0x50] sm:$0xff]
        %v522 = vld [vmem:[#allocation2 + $0x58] sm:$0xff]
        %v523 = vld [vmem:[#allocation2 + $0x60] sm:$0xff]
        %v524 = vld [vmem:[#allocation2 + $0x68] sm:$0xff]
        %v525 = vld [vmem:[#allocation2 + $0x70] sm:$0xff]
        %v526 = vld [vmem:[#allocation2 + $0x78] sm:$0xff]
        %vm527 = vcmask 130048
        %v529 = vsel %vm527, %v509, 0
        %v532 = vsel %vm527, %v510, 0
        %534 = vmatpush.msra.mxu0 0.0
        %535 = vmatpush.msra.mxu0 0.0
        %536 = vmatpush.msra.mxu0 0.0
        %537 = vmatpush.msra.mxu0 0.0
        %538 = vmatpush.msra.mxu0 0.0
        %539 = vmatpush.msra.mxu0 0.0
        %540 = vmatpush.msra.mxu0 0.0
        %541 = vmatpush.msra.mxu0 0.0
        %542 = vmatpush.msra.mxu0 0.0
        %543 = vmatpush.msra.mxu0 0.0
        %544 = vmatpush.msra.mxu0 0.0
        %545 = vmatpush.msra.mxu0 0.0
        %546 = vmatpush.msra.mxu0 0.0
        %547 = vmatpush.msra.mxu0 0.0
        %548 = vmatpush.msra.mxu0 %v519
        %549 = vmatpush.msra.mxu0 %v511
        %550 = vmatmul.f32.gmra.mxu0 %v529
        %v551 = vpop.f32.mrf.mxu0
        %v552 = vadd.f32 0.0, %v551
        %553 = vmatmul.f32.gmra.mxu0 %v532
        %v554 = vpop.f32.mrf.mxu0
        %v555 = vadd.f32 0.0, %v554
        %556 = vdwg.mxu0
        %557 = vmatpush.msra.mxu0 0.0
        %558 = vmatpush.msra.mxu0 0.0
        %559 = vmatpush.msra.mxu0 0.0
        %560 = vmatpush.msra.mxu0 0.0
        %561 = vmatpush.msra.mxu0 0.0
        %562 = vmatpush.msra.mxu0 0.0
        %563 = vmatpush.msra.mxu0 0.0
        %564 = vmatpush.msra.mxu0 0.0
        %565 = vmatpush.msra.mxu0 0.0
        %566 = vmatpush.msra.mxu0 0.0
        %567 = vmatpush.msra.mxu0 0.0
        %568 = vmatpush.msra.mxu0 0.0
        %569 = vmatpush.msra.mxu0 0.0
        %570 = vmatpush.msra.mxu0 0.0
        %571 = vmatpush.msra.mxu0 %v520
        %572 = vmatpush.msra.mxu0 %v512
        %573 = vmatmul.f32.gmra.mxu0 %v529
        %v574 = vpop.f32.mrf.mxu0
        %v575 = vadd.f32 0.0, %v574
        %576 = vmatmul.f32.gmra.mxu0 %v532
        %v577 = vpop.f32.mrf.mxu0
        %v578 = vadd.f32 0.0, %v577
        %579 = vdwg.mxu0
        %580 = vmatpush.msra.mxu0 0.0
        %581 = vmatpush.msra.mxu0 0.0
        %582 = vmatpush.msra.mxu0 0.0
        %583 = vmatpush.msra.mxu0 0.0
        %584 = vmatpush.msra.mxu0 0.0
        %585 = vmatpush.msra.mxu0 0.0
        %586 = vmatpush.msra.mxu0 0.0
        %587 = vmatpush.msra.mxu0 0.0
        %588 = vmatpush.msra.mxu0 0.0
        %589 = vmatpush.msra.mxu0 0.0
        %590 = vmatpush.msra.mxu0 0.0
        %591 = vmatpush.msra.mxu0 0.0
        %592 = vmatpush.msra.mxu0 0.0
        %593 = vmatpush.msra.mxu0 0.0
        %594 = vmatpush.msra.mxu0 %v521
        %595 = vmatpush.msra.mxu0 %v513
        %596 = vmatmul.f32.gmra.mxu0 %v529
        %v597 = vpop.f32.mrf.mxu0
        %v598 = vadd.f32 0.0, %v597
        %599 = vmatmul.f32.gmra.mxu0 %v532
        %v600 = vpop.f32.mrf.mxu0
        %v601 = vadd.f32 0.0, %v600
        %602 = vdwg.mxu0
        %603 = vmatpush.msra.mxu0 0.0
        %604 = vmatpush.msra.mxu0 0.0
        %605 = vmatpush.msra.mxu0 0.0
        %606 = vmatpush.msra.mxu0 0.0
        %607 = vmatpush.msra.mxu0 0.0
        %608 = vmatpush.msra.mxu0 0.0
        %609 = vmatpush.msra.mxu0 0.0
        %610 = vmatpush.msra.mxu0 0.0
        %611 = vmatpush.msra.mxu0 0.0
        %612 = vmatpush.msra.mxu0 0.0
        %613 = vmatpush.msra.mxu0 0.0
        %614 = vmatpush.msra.mxu0 0.0
        %615 = vmatpush.msra.mxu0 0.0
        %616 = vmatpush.msra.mxu0 0.0
        %617 = vmatpush.msra.mxu0 %v522
        %618 = vmatpush.msra.mxu0 %v514
        %619 = vmatmul.f32.gmra.mxu0 %v529
        %v620 = vpop.f32.mrf.mxu0
        %v621 = vadd.f32 0.0, %v620
        %622 = vmatmul.f32.gmra.mxu0 %v532
        %v623 = vpop.f32.mrf.mxu0
        %v624 = vadd.f32 0.0, %v623
        %625 = vdwg.mxu0
        %626 = vmatpush.msra.mxu0 0.0
        %627 = vmatpush.msra.mxu0 0.0
        %628 = vmatpush.msra.mxu0 0.0
        %629 = vmatpush.msra.mxu0 0.0
        %630 = vmatpush.msra.mxu0 0.0
        %631 = vmatpush.msra.mxu0 0.0
        %632 = vmatpush.msra.mxu0 0.0
        %633 = vmatpush.msra.mxu0 0.0
        %634 = vmatpush.msra.mxu0 0.0
        %635 = vmatpush.msra.mxu0 0.0
        %636 = vmatpush.msra.mxu0 0.0
        %637 = vmatpush.msra.mxu0 0.0
        %638 = vmatpush.msra.mxu0 0.0
        %639 = vmatpush.msra.mxu0 0.0
        %640 = vmatpush.msra.mxu0 %v523
        %641 = vmatpush.msra.mxu0 %v515
        %642 = vmatmul.f32.gmra.mxu0 %v529
        %v643 = vpop.f32.mrf.mxu0
        %v644 = vadd.f32 0.0, %v643
        %645 = vmatmul.f32.gmra.mxu0 %v532
        %v646 = vpop.f32.mrf.mxu0
        %v647 = vadd.f32 0.0, %v646
        %648 = vdwg.mxu0
        %649 = vmatpush.msra.mxu0 0.0
        %650 = vmatpush.msra.mxu0 0.0
        %651 = vmatpush.msra.mxu0 0.0
        %652 = vmatpush.msra.mxu0 0.0
        %653 = vmatpush.msra.mxu0 0.0
        %654 = vmatpush.msra.mxu0 0.0
        %655 = vmatpush.msra.mxu0 0.0
        %656 = vmatpush.msra.mxu0 0.0
        %657 = vmatpush.msra.mxu0 0.0
        %658 = vmatpush.msra.mxu0 0.0
        %659 = vmatpush.msra.mxu0 0.0
        %660 = vmatpush.msra.mxu0 0.0
        %661 = vmatpush.msra.mxu0 0.0
        %662 = vmatpush.msra.mxu0 0.0
        %663 = vmatpush.msra.mxu0 %v524
        %664 = vmatpush.msra.mxu0 %v516
        %665 = vmatmul.f32.gmra.mxu0 %v529
        %v666 = vpop.f32.mrf.mxu0
        %v667 = vadd.f32 0.0, %v666
        %668 = vmatmul.f32.gmra.mxu0 %v532
        %v669 = vpop.f32.mrf.mxu0
        %v670 = vadd.f32 0.0, %v669
        %671 = vdwg.mxu0
        %672 = vmatpush.msra.mxu0 0.0
        %673 = vmatpush.msra.mxu0 0.0
        %674 = vmatpush.msra.mxu0 0.0
        %675 = vmatpush.msra.mxu0 0.0
        %676 = vmatpush.msra.mxu0 0.0
        %677 = vmatpush.msra.mxu0 0.0
        %678 = vmatpush.msra.mxu0 0.0
        %679 = vmatpush.msra.mxu0 0.0
        %680 = vmatpush.msra.mxu0 0.0
        %681 = vmatpush.msra.mxu0 0.0
        %682 = vmatpush.msra.mxu0 0.0
        %683 = vmatpush.msra.mxu0 0.0
        %684 = vmatpush.msra.mxu0 0.0
        %685 = vmatpush.msra.mxu0 0.0
        %686 = vmatpush.msra.mxu0 %v525
        %687 = vmatpush.msra.mxu0 %v517
        %688 = vmatmul.f32.gmra.mxu0 %v529
        %v689 = vpop.f32.mrf.mxu0
        %v690 = vadd.f32 0.0, %v689
        %691 = vmatmul.f32.gmra.mxu0 %v532
        %v692 = vpop.f32.mrf.mxu0
        %v693 = vadd.f32 0.0, %v692
        %694 = vdwg.mxu0
        %695 = vmatpush.msra.mxu0 0.0
        %696 = vmatpush.msra.mxu0 0.0
        %697 = vmatpush.msra.mxu0 0.0
        %698 = vmatpush.msra.mxu0 0.0
        %699 = vmatpush.msra.mxu0 0.0
        %700 = vmatpush.msra.mxu0 0.0
        %701 = vmatpush.msra.mxu0 0.0
        %702 = vmatpush.msra.mxu0 0.0
        %703 = vmatpush.msra.mxu0 0.0
        %704 = vmatpush.msra.mxu0 0.0
        %705 = vmatpush.msra.mxu0 0.0
        %706 = vmatpush.msra.mxu0 0.0
        %707 = vmatpush.msra.mxu0 0.0
        %708 = vmatpush.msra.mxu0 0.0
        %709 = vmatpush.msra.mxu0 %v526
        %710 = vmatpush.msra.mxu0 %v518
        %711 = vmatmul.f32.gmra.mxu0 %v529
        %v712 = vpop.f32.mrf.mxu0
        %v713 = vadd.f32 0.0, %v712
        %714 = vmatmul.f32.gmra.mxu0 %v532
        %v715 = vpop.f32.mrf.mxu0
        %v716 = vadd.f32 0.0, %v715
        %717 = vdwg.mxu0
        %v718 = vld [vmem:[%s357] sm:$0xff]
        %v719 = vld [vmem:[%s357 + $0x8] sm:$0xff]
        %v720 = vld [vmem:[%s357 + $0x10] sm:$0xff]
        %v721 = vld [vmem:[%s357 + $0x18] sm:$0xff]
        %v722 = vld [vmem:[%s357 + $0x20] sm:$0xff]
        %v723 = vld [vmem:[%s357 + $0x28] sm:$0xff]
        %v724 = vld [vmem:[%s357 + $0x30] sm:$0xff]
        %v725 = vld [vmem:[%s357 + $0x38] sm:$0xff]
        %v726 = vld [vmem:[%s363] sm:$0xff]
        %v727 = vld [vmem:[%s363 + $0x8] sm:$0xff]
        %v728 = vld [vmem:[%s363 + $0x10] sm:$0xff]
        %v729 = vld [vmem:[%s363 + $0x18] sm:$0xff]
        %v730 = vld [vmem:[%s363 + $0x20] sm:$0xff]
        %v731 = vld [vmem:[%s363 + $0x28] sm:$0xff]
        %v732 = vld [vmem:[%s363 + $0x30] sm:$0xff]
        %v733 = vld [vmem:[%s363 + $0x38] sm:$0xff]
        %v734 = vmul.f32 %v552, %v726
        %v735 = vmul.f32 %v575, %v727
        %v736 = vmul.f32 %v598, %v728
        %v737 = vmul.f32 %v621, %v729
        %v738 = vmul.f32 %v644, %v730
        %v739 = vmul.f32 %v667, %v731
        %v740 = vmul.f32 %v690, %v732
        %v741 = vmul.f32 %v713, %v733
        %v742 = vmul.f32 %v555, %v718
        %v743 = vmul.f32 %v578, %v719
        %v744 = vmul.f32 %v601, %v720
        %v745 = vmul.f32 %v624, %v721
        %v746 = vmul.f32 %v647, %v722
        %v747 = vmul.f32 %v670, %v723
        %v748 = vmul.f32 %v693, %v724
        %v749 = vmul.f32 %v716, %v725
        %v750 = vadd.f32 %v734, %v742
        %v751 = vadd.f32 %v735, %v743
        %v752 = vadd.f32 %v736, %v744
        %v753 = vadd.f32 %v737, %v745
        %v754 = vadd.f32 %v738, %v746
        %v755 = vadd.f32 %v739, %v747
        %v756 = vadd.f32 %v740, %v748
        %v757 = vadd.f32 %v741, %v749
        %758 = vst [vmem:[%s342] sm:$0xff] %v750
        %759 = vst [vmem:[%s342 + $0x8] sm:$0xff] %v751
        %760 = vst [vmem:[%s342 + $0x10] sm:$0xff] %v752
        %761 = vst [vmem:[%s342 + $0x18] sm:$0xff] %v753
        %762 = vst [vmem:[%s342 + $0x20] sm:$0xff] %v754
        %763 = vst [vmem:[%s342 + $0x28] sm:$0xff] %v755
        %764 = vst [vmem:[%s342 + $0x30] sm:$0xff] %v756
        %765 = vst [vmem:[%s342 + $0x38] sm:$0xff] %v757
        %v766 = vmul.f32 %v552, %v718
        %v767 = vmul.f32 %v575, %v719
        %v768 = vmul.f32 %v598, %v720
        %v769 = vmul.f32 %v621, %v721
        %v770 = vmul.f32 %v644, %v722
        %v771 = vmul.f32 %v667, %v723
        %v772 = vmul.f32 %v690, %v724
        %v773 = vmul.f32 %v713, %v725
        %v774 = vmul.f32 %v555, %v726
        %v775 = vmul.f32 %v578, %v727
        %v776 = vmul.f32 %v601, %v728
        %v777 = vmul.f32 %v624, %v729
        %v778 = vmul.f32 %v647, %v730
        %v779 = vmul.f32 %v670, %v731
        %v780 = vmul.f32 %v693, %v732
        %v781 = vmul.f32 %v716, %v733
        %v782 = vsub.f32 %v766, %v774
        %v783 = vsub.f32 %v767, %v775
        %v784 = vsub.f32 %v768, %v776
        %v785 = vsub.f32 %v769, %v777
        %v786 = vsub.f32 %v770, %v778
        %v787 = vsub.f32 %v771, %v779
        %v788 = vsub.f32 %v772, %v780
        %v789 = vsub.f32 %v773, %v781
        %790 = vst [vmem:[%s342 + $0x40] sm:$0xff] %v782
        %791 = vst [vmem:[%s342 + $0x48] sm:$0xff] %v783
        %792 = vst [vmem:[%s342 + $0x50] sm:$0xff] %v784
        %793 = vst [vmem:[%s342 + $0x58] sm:$0xff] %v785
        %794 = vst [vmem:[%s342 + $0x60] sm:$0xff] %v786
        %795 = vst [vmem:[%s342 + $0x68] sm:$0xff] %v787
        %796 = vst [vmem:[%s342 + $0x70] sm:$0xff] %v788
        %797 = vst [vmem:[%s342 + $0x78] sm:$0xff] %v789
        %v798 = vld [vmem:[%s4] sm:$0xff]
        %v799 = vld [vmem:[%s4 + $0x8] sm:$0xff]
        %v800 = vld [vmem:[%s342] sm:$0xff]
        %v801 = vld [vmem:[%s342 + $0x8] sm:$0xff]
        %v802 = vld [vmem:[%s342 + $0x10] sm:$0xff]
        %v803 = vld [vmem:[%s342 + $0x18] sm:$0xff]
        %v804 = vld [vmem:[%s342 + $0x20] sm:$0xff]
        %v805 = vld [vmem:[%s342 + $0x28] sm:$0xff]
        %v806 = vld [vmem:[%s342 + $0x30] sm:$0xff]
        %v807 = vld [vmem:[%s342 + $0x38] sm:$0xff]
        %v808 = vld [vmem:[%s342 + $0x40] sm:$0xff]
        %v809 = vld [vmem:[%s342 + $0x48] sm:$0xff]
        %v810 = vld [vmem:[%s342 + $0x50] sm:$0xff]
        %v811 = vld [vmem:[%s342 + $0x58] sm:$0xff]
        %v812 = vld [vmem:[%s342 + $0x60] sm:$0xff]
        %v813 = vld [vmem:[%s342 + $0x68] sm:$0xff]
        %v814 = vld [vmem:[%s342 + $0x70] sm:$0xff]
        %v815 = vld [vmem:[%s342 + $0x78] sm:$0xff]
        %v817 = vsel %vm527, %v798, 0
        %v820 = vsel %vm527, %v799, 0
        %822 = vmatpush.msra.mxu0 0.0
        %823 = vmatpush.msra.mxu0 0.0
        %824 = vmatpush.msra.mxu0 0.0
        %825 = vmatpush.msra.mxu0 0.0
        %826 = vmatpush.msra.mxu0 0.0
        %827 = vmatpush.msra.mxu0 0.0
        %828 = vmatpush.msra.mxu0 0.0
        %829 = vmatpush.msra.mxu0 0.0
        %830 = vmatpush.msra.mxu0 0.0
        %831 = vmatpush.msra.mxu0 0.0
        %832 = vmatpush.msra.mxu0 0.0
        %833 = vmatpush.msra.mxu0 0.0
        %834 = vmatpush.msra.mxu0 0.0
        %835 = vmatpush.msra.mxu0 0.0
        %836 = vmatpush.msra.mxu0 %v808
        %837 = vmatpush.msra.mxu0 %v800
        %838 = vmatmul.f32.gmra.mxu0 %v817
        %v839 = vpop.f32.mrf.mxu0
        %v840 = vadd.f32 0.0, %v839
        %841 = vmatmul.f32.gmra.mxu0 %v820
        %v842 = vpop.f32.mrf.mxu0
        %v843 = vadd.f32 0.0, %v842
        %844 = vdwg.mxu0
        %845 = vmatpush.msra.mxu0 0.0
        %846 = vmatpush.msra.mxu0 0.0
        %847 = vmatpush.msra.mxu0 0.0
        %848 = vmatpush.msra.mxu0 0.0
        %849 = vmatpush.msra.mxu0 0.0
        %850 = vmatpush.msra.mxu0 0.0
        %851 = vmatpush.msra.mxu0 0.0
        %852 = vmatpush.msra.mxu0 0.0
        %853 = vmatpush.msra.mxu0 0.0
        %854 = vmatpush.msra.mxu0 0.0
        %855 = vmatpush.msra.mxu0 0.0
        %856 = vmatpush.msra.mxu0 0.0
        %857 = vmatpush.msra.mxu0 0.0
        %858 = vmatpush.msra.mxu0 0.0
        %859 = vmatpush.msra.mxu0 %v809
        %860 = vmatpush.msra.mxu0 %v801
        %861 = vmatmul.f32.gmra.mxu0 %v817
        %v862 = vpop.f32.mrf.mxu0
        %v863 = vadd.f32 0.0, %v862
        %864 = vmatmul.f32.gmra.mxu0 %v820
        %v865 = vpop.f32.mrf.mxu0
        %v866 = vadd.f32 0.0, %v865
        %867 = vdwg.mxu0
        %868 = vmatpush.msra.mxu0 0.0
        %869 = vmatpush.msra.mxu0 0.0
        %870 = vmatpush.msra.mxu0 0.0
        %871 = vmatpush.msra.mxu0 0.0
        %872 = vmatpush.msra.mxu0 0.0
        %873 = vmatpush.msra.mxu0 0.0
        %874 = vmatpush.msra.mxu0 0.0
        %875 = vmatpush.msra.mxu0 0.0
        %876 = vmatpush.msra.mxu0 0.0
        %877 = vmatpush.msra.mxu0 0.0
        %878 = vmatpush.msra.mxu0 0.0
        %879 = vmatpush.msra.mxu0 0.0
        %880 = vmatpush.msra.mxu0 0.0
        %881 = vmatpush.msra.mxu0 0.0
        %882 = vmatpush.msra.mxu0 %v810
        %883 = vmatpush.msra.mxu0 %v802
        %884 = vmatmul.f32.gmra.mxu0 %v817
        %v885 = vpop.f32.mrf.mxu0
        %v886 = vadd.f32 0.0, %v885
        %887 = vmatmul.f32.gmra.mxu0 %v820
        %v888 = vpop.f32.mrf.mxu0
        %v889 = vadd.f32 0.0, %v888
        %890 = vdwg.mxu0
        %891 = vmatpush.msra.mxu0 0.0
        %892 = vmatpush.msra.mxu0 0.0
        %893 = vmatpush.msra.mxu0 0.0
        %894 = vmatpush.msra.mxu0 0.0
        %895 = vmatpush.msra.mxu0 0.0
        %896 = vmatpush.msra.mxu0 0.0
        %897 = vmatpush.msra.mxu0 0.0
        %898 = vmatpush.msra.mxu0 0.0
        %899 = vmatpush.msra.mxu0 0.0
        %900 = vmatpush.msra.mxu0 0.0
        %901 = vmatpush.msra.mxu0 0.0
        %902 = vmatpush.msra.mxu0 0.0
        %903 = vmatpush.msra.mxu0 0.0
        %904 = vmatpush.msra.mxu0 0.0
        %905 = vmatpush.msra.mxu0 %v811
        %906 = vmatpush.msra.mxu0 %v803
        %907 = vmatmul.f32.gmra.mxu0 %v817
        %v908 = vpop.f32.mrf.mxu0
        %v909 = vadd.f32 0.0, %v908
        %910 = vmatmul.f32.gmra.mxu0 %v820
        %v911 = vpop.f32.mrf.mxu0
        %v912 = vadd.f32 0.0, %v911
        %913 = vdwg.mxu0
        %914 = vmatpush.msra.mxu0 0.0
        %915 = vmatpush.msra.mxu0 0.0
        %916 = vmatpush.msra.mxu0 0.0
        %917 = vmatpush.msra.mxu0 0.0
        %918 = vmatpush.msra.mxu0 0.0
        %919 = vmatpush.msra.mxu0 0.0
        %920 = vmatpush.msra.mxu0 0.0
        %921 = vmatpush.msra.mxu0 0.0
        %922 = vmatpush.msra.mxu0 0.0
        %923 = vmatpush.msra.mxu0 0.0
        %924 = vmatpush.msra.mxu0 0.0
        %925 = vmatpush.msra.mxu0 0.0
        %926 = vmatpush.msra.mxu0 0.0
        %927 = vmatpush.msra.mxu0 0.0
        %928 = vmatpush.msra.mxu0 %v812
        %929 = vmatpush.msra.mxu0 %v804
        %930 = vmatmul.f32.gmra.mxu0 %v817
        %v931 = vpop.f32.mrf.mxu0
        %v932 = vadd.f32 0.0, %v931
        %933 = vmatmul.f32.gmra.mxu0 %v820
        %v934 = vpop.f32.mrf.mxu0
        %v935 = vadd.f32 0.0, %v934
        %936 = vdwg.mxu0
        %937 = vmatpush.msra.mxu0 0.0
        %938 = vmatpush.msra.mxu0 0.0
        %939 = vmatpush.msra.mxu0 0.0
        %940 = vmatpush.msra.mxu0 0.0
        %941 = vmatpush.msra.mxu0 0.0
        %942 = vmatpush.msra.mxu0 0.0
        %943 = vmatpush.msra.mxu0 0.0
        %944 = vmatpush.msra.mxu0 0.0
        %945 = vmatpush.msra.mxu0 0.0
        %946 = vmatpush.msra.mxu0 0.0
        %947 = vmatpush.msra.mxu0 0.0
        %948 = vmatpush.msra.mxu0 0.0
        %949 = vmatpush.msra.mxu0 0.0
        %950 = vmatpush.msra.mxu0 0.0
        %951 = vmatpush.msra.mxu0 %v813
        %952 = vmatpush.msra.mxu0 %v805
        %953 = vmatmul.f32.gmra.mxu0 %v817
        %v954 = vpop.f32.mrf.mxu0
        %v955 = vadd.f32 0.0, %v954
        %956 = vmatmul.f32.gmra.mxu0 %v820
        %v957 = vpop.f32.mrf.mxu0
        %v958 = vadd.f32 0.0, %v957
        %959 = vdwg.mxu0
        %960 = vmatpush.msra.mxu0 0.0
        %961 = vmatpush.msra.mxu0 0.0
        %962 = vmatpush.msra.mxu0 0.0
        %963 = vmatpush.msra.mxu0 0.0
        %964 = vmatpush.msra.mxu0 0.0
        %965 = vmatpush.msra.mxu0 0.0
        %966 = vmatpush.msra.mxu0 0.0
        %967 = vmatpush.msra.mxu0 0.0
        %968 = vmatpush.msra.mxu0 0.0
        %969 = vmatpush.msra.mxu0 0.0
        %970 = vmatpush.msra.mxu0 0.0
        %971 = vmatpush.msra.mxu0 0.0
        %972 = vmatpush.msra.mxu0 0.0
        %973 = vmatpush.msra.mxu0 0.0
        %974 = vmatpush.msra.mxu0 %v814
        %975 = vmatpush.msra.mxu0 %v806
        %976 = vmatmul.f32.gmra.mxu0 %v817
        %v977 = vpop.f32.mrf.mxu0
        %v978 = vadd.f32 0.0, %v977
        %979 = vmatmul.f32.gmra.mxu0 %v820
        %v980 = vpop.f32.mrf.mxu0
        %v981 = vadd.f32 0.0, %v980
        %982 = vdwg.mxu0
        %983 = vmatpush.msra.mxu0 0.0
        %984 = vmatpush.msra.mxu0 0.0
        %985 = vmatpush.msra.mxu0 0.0
        %986 = vmatpush.msra.mxu0 0.0
        %987 = vmatpush.msra.mxu0 0.0
        %988 = vmatpush.msra.mxu0 0.0
        %989 = vmatpush.msra.mxu0 0.0
        %990 = vmatpush.msra.mxu0 0.0
        %991 = vmatpush.msra.mxu0 0.0
        %992 = vmatpush.msra.mxu0 0.0
        %993 = vmatpush.msra.mxu0 0.0
        %994 = vmatpush.msra.mxu0 0.0
        %995 = vmatpush.msra.mxu0 0.0
        %996 = vmatpush.msra.mxu0 0.0
        %997 = vmatpush.msra.mxu0 %v815
        %998 = vmatpush.msra.mxu0 %v807
        %999 = vmatmul.f32.gmra.mxu0 %v817
        %v1000 = vpop.f32.mrf.mxu0
        %v1001 = vadd.f32 0.0, %v1000
        %1002 = vmatmul.f32.gmra.mxu0 %v820
        %v1003 = vpop.f32.mrf.mxu0
        %v1004 = vadd.f32 0.0, %v1003
        %1005 = vdwg.mxu0
        %1006 = vst [vmem:[#allocation3] sm:$0xff] %v843
        %1007 = vst [vmem:[#allocation3 + $0x8] sm:$0xff] %v840
        %1008 = vst [vmem:[#allocation3 + $0x10] sm:$0xff] %v866
        %1009 = vst [vmem:[#allocation3 + $0x18] sm:$0xff] %v863
        %1010 = vst [vmem:[#allocation3 + $0x20] sm:$0xff] %v889
        %1011 = vst [vmem:[#allocation3 + $0x28] sm:$0xff] %v886
        %1012 = vst [vmem:[#allocation3 + $0x30] sm:$0xff] %v912
        %1013 = vst [vmem:[#allocation3 + $0x38] sm:$0xff] %v909
        %1014 = vst [vmem:[#allocation3 + $0x40] sm:$0xff] %v935
        %1015 = vst [vmem:[#allocation3 + $0x48] sm:$0xff] %v932
        %1016 = vst [vmem:[#allocation3 + $0x50] sm:$0xff] %v958
        %1017 = vst [vmem:[#allocation3 + $0x58] sm:$0xff] %v955
        %1018 = vst [vmem:[#allocation3 + $0x60] sm:$0xff] %v981
        %1019 = vst [vmem:[#allocation3 + $0x68] sm:$0xff] %v978
        %1020 = vst [vmem:[#allocation3 + $0x70] sm:$0xff] %v1004
        %1021 = vst [vmem:[#allocation3 + $0x78] sm:$0xff] %v1001
        %v1022 = vld [vmem:[#allocation3] sm:$0xff]
        %v1023 = vld [vmem:[#allocation3 + $0x8] sm:$0xff]
        %v1024 = vld [vmem:[#allocation3 + $0x10] sm:$0xff]
        %v1025 = vld [vmem:[#allocation3 + $0x18] sm:$0xff]
        %v1026 = vld [vmem:[#allocation3 + $0x20] sm:$0xff]
        %v1027 = vld [vmem:[#allocation3 + $0x28] sm:$0xff]
        %v1028 = vld [vmem:[#allocation3 + $0x30] sm:$0xff]
        %v1029 = vld [vmem:[#allocation3 + $0x38] sm:$0xff]
        %v1030 = vld [vmem:[#allocation3 + $0x40] sm:$0xff]
        %v1031 = vld [vmem:[#allocation3 + $0x48] sm:$0xff]
        %v1032 = vld [vmem:[#allocation3 + $0x50] sm:$0xff]
        %v1033 = vld [vmem:[#allocation3 + $0x58] sm:$0xff]
        %v1034 = vld [vmem:[#allocation3 + $0x60] sm:$0xff]
        %v1035 = vld [vmem:[#allocation3 + $0x68] sm:$0xff]
        %v1036 = vld [vmem:[#allocation3 + $0x70] sm:$0xff]
        %v1037 = vld [vmem:[#allocation3 + $0x78] sm:$0xff]
        %v1038 = vld [vmem:[%s5] sm:$0xff]
        %v1039 = vld [vmem:[%s5 + $0x8] sm:$0xff]
        %v1040 = vld [vmem:[%s5 + $0x10] sm:$0xff]
        %v1041 = vld [vmem:[%s5 + $0x18] sm:$0xff]
        %v1042 = vld [vmem:[%s5 + $0x20] sm:$0xff]
        %v1043 = vld [vmem:[%s5 + $0x28] sm:$0xff]
        %v1044 = vld [vmem:[%s5 + $0x30] sm:$0xff]
        %v1045 = vld [vmem:[%s5 + $0x38] sm:$0xff]
        %v1046 = vld [vmem:[%s5 + $0x40] sm:$0xff]
        %v1047 = vld [vmem:[%s5 + $0x48] sm:$0xff]
        %v1048 = vld [vmem:[%s5 + $0x50] sm:$0xff]
        %v1049 = vld [vmem:[%s5 + $0x58] sm:$0xff]
        %v1050 = vld [vmem:[%s5 + $0x60] sm:$0xff]
        %v1051 = vld [vmem:[%s5 + $0x68] sm:$0xff]
        %v1052 = vld [vmem:[%s5 + $0x70] sm:$0xff]
        %v1053 = vld [vmem:[%s5 + $0x78] sm:$0xff]
        %v1054 = vld [vmem:[%s5 + $0x80] sm:$0xff]
        %v1055 = vld [vmem:[%s5 + $0x88] sm:$0xff]
        %v1056 = vld [vmem:[%s5 + $0x90] sm:$0xff]
        %v1057 = vld [vmem:[%s5 + $0x98] sm:$0xff]
        %v1058 = vld [vmem:[%s5 + $0xa0] sm:$0xff]
        %v1059 = vld [vmem:[%s5 + $0xa8] sm:$0xff]
        %v1060 = vld [vmem:[%s5 + $0xb0] sm:$0xff]
        %v1061 = vld [vmem:[%s5 + $0xb8] sm:$0xff]
        %v1062 = vld [vmem:[%s5 + $0xc0] sm:$0xff]
        %v1063 = vld [vmem:[%s5 + $0xc8] sm:$0xff]
        %v1064 = vld [vmem:[%s5 + $0xd0] sm:$0xff]
        %v1065 = vld [vmem:[%s5 + $0xd8] sm:$0xff]
        %v1066 = vld [vmem:[%s5 + $0xe0] sm:$0xff]
        %v1067 = vld [vmem:[%s5 + $0xe8] sm:$0xff]
        %v1068 = vld [vmem:[%s5 + $0xf0] sm:$0xff]
        %v1069 = vld [vmem:[%s5 + $0xf8] sm:$0xff]
        %1070 = vmatpush.msra.mxu0 %v1053
        %1071 = vmatpush.msra.mxu0 %v1052
        %1072 = vmatpush.msra.mxu0 %v1051
        %1073 = vmatpush.msra.mxu0 %v1050
        %1074 = vmatpush.msra.mxu0 %v1049
        %1075 = vmatpush.msra.mxu0 %v1048
        %1076 = vmatpush.msra.mxu0 %v1047
        %1077 = vmatpush.msra.mxu0 %v1046
        %1078 = vmatpush.msra.mxu0 %v1045
        %1079 = vmatpush.msra.mxu0 %v1044
        %1080 = vmatpush.msra.mxu0 %v1043
        %1081 = vmatpush.msra.mxu0 %v1042
        %1082 = vmatpush.msra.mxu0 %v1041
        %1083 = vmatpush.msra.mxu0 %v1040
        %1084 = vmatpush.msra.mxu0 %v1039
        %1085 = vmatpush.msra.mxu0 %v1038
        %1086 = vmatmul.f32.gmra.mxu0 %v1022
        %v1087 = vpop.f32.mrf.mxu0
        %v1088 = vadd.f32 0.0, %v1087
        %1089 = vmatmul.f32.gmra.mxu0 %v1024
        %v1090 = vpop.f32.mrf.mxu0
        %v1091 = vadd.f32 0.0, %v1090
        %1092 = vmatmul.f32.gmra.mxu0 %v1026
        %v1093 = vpop.f32.mrf.mxu0
        %v1094 = vadd.f32 0.0, %v1093
        %1095 = vmatmul.f32.gmra.mxu0 %v1028
        %v1096 = vpop.f32.mrf.mxu0
        %v1097 = vadd.f32 0.0, %v1096
        %1098 = vmatmul.f32.gmra.mxu0 %v1030
        %v1099 = vpop.f32.mrf.mxu0
        %v1100 = vadd.f32 0.0, %v1099
        %1101 = vmatmul.f32.gmra.mxu0 %v1032
        %v1102 = vpop.f32.mrf.mxu0
        %v1103 = vadd.f32 0.0, %v1102
        %1104 = vmatmul.f32.gmra.mxu0 %v1034
        %v1105 = vpop.f32.mrf.mxu0
        %v1106 = vadd.f32 0.0, %v1105
        %1107 = vmatmul.f32.gmra.mxu0 %v1036
        %v1108 = vpop.f32.mrf.mxu0
        %v1109 = vadd.f32 0.0, %v1108
        %1110 = vdwg.mxu0
        %1111 = vmatpush.msra.mxu0 %v1069
        %1112 = vmatpush.msra.mxu0 %v1068
        %1113 = vmatpush.msra.mxu0 %v1067
        %1114 = vmatpush.msra.mxu0 %v1066
        %1115 = vmatpush.msra.mxu0 %v1065
        %1116 = vmatpush.msra.mxu0 %v1064
        %1117 = vmatpush.msra.mxu0 %v1063
        %1118 = vmatpush.msra.mxu0 %v1062
        %1119 = vmatpush.msra.mxu0 %v1061
        %1120 = vmatpush.msra.mxu0 %v1060
        %1121 = vmatpush.msra.mxu0 %v1059
        %1122 = vmatpush.msra.mxu0 %v1058
        %1123 = vmatpush.msra.mxu0 %v1057
        %1124 = vmatpush.msra.mxu0 %v1056
        %1125 = vmatpush.msra.mxu0 %v1055
        %1126 = vmatpush.msra.mxu0 %v1054
        %1127 = vmatmul.f32.gmra.mxu0 %v1023
        %v1128 = vpop.f32.mrf.mxu0
        %v1129 = vadd.f32 %v1088, %v1128
        %1130 = vmatmul.f32.gmra.mxu0 %v1025
        %v1131 = vpop.f32.mrf.mxu0
        %v1132 = vadd.f32 %v1091, %v1131
        %1133 = vmatmul.f32.gmra.mxu0 %v1027
        %v1134 = vpop.f32.mrf.mxu0
        %v1135 = vadd.f32 %v1094, %v1134
        %1136 = vmatmul.f32.gmra.mxu0 %v1029
        %v1137 = vpop.f32.mrf.mxu0
        %v1138 = vadd.f32 %v1097, %v1137
        %1139 = vmatmul.f32.gmra.mxu0 %v1031
        %v1140 = vpop.f32.mrf.mxu0
        %v1141 = vadd.f32 %v1100, %v1140
        %1142 = vmatmul.f32.gmra.mxu0 %v1033
        %v1143 = vpop.f32.mrf.mxu0
        %v1144 = vadd.f32 %v1103, %v1143
        %1145 = vmatmul.f32.gmra.mxu0 %v1035
        %v1146 = vpop.f32.mrf.mxu0
        %v1147 = vadd.f32 %v1106, %v1146
        %1148 = vmatmul.f32.gmra.mxu0 %v1037
        %v1149 = vpop.f32.mrf.mxu0
        %v1150 = vadd.f32 %v1109, %v1149
        %1151 = vdwg.mxu0
        %1152 = vst.msk [vmem:[%s373] sm:$0xff] %vm386, %v1129
        %1153 = vst.msk [vmem:[%s373 + $0x8] sm:$0xff] %vm386, %v1132
        %1154 = vst.msk [vmem:[%s373 + $0x10] sm:$0xff] %vm386, %v1135
        %1155 = vst.msk [vmem:[%s373 + $0x18] sm:$0xff] %vm386, %v1138
        %1156 = vst.msk [vmem:[%s373 + $0x20] sm:$0xff] %vm386, %v1141
        %1157 = vst.msk [vmem:[%s373 + $0x28] sm:$0xff] %vm386, %v1144
        %1158 = vst.msk [vmem:[%s373 + $0x30] sm:$0xff] %vm386, %v1147
        %1159 = vst.msk [vmem:[%s373 + $0x38] sm:$0xff] %vm386, %v1150
        %s1160 = smul.u32 8, %s27
        %p1161 = scmp.lt.s32.totalorder %s26, 1
        %s1162 = scalar_select %p1161, %s26, 1
        %p1163 = scmp.lt.s32.totalorder %s1160, 7
        %s1164 = scalar_select %p1163, %s1160, 7
        %s1165 = smul.addr %s1162, 8
        %s1166 = sadd.s32 %s1164, %s1165
        %s1167 = smul.addr %s1166, 8
        %s1168 = scalar_lea.vmem %s6, %s1167
        %s1169 = sand.u32 %s215, 1
        %s1170 = scalar_lea.sflag [#allocation5], %s1169
        %s1171 = sand.u32 %s215, 1
        %s1172 = smul.addr %s1171, 128
        %s1173 = scalar_lea.vmem [#allocation4], %s1172
        // Predicated region
        $region45: #{tpu_custom_call.1} parent=43 // pred_check
          %p1174 = pneg %p197
        $region46: #{tpu_custom_call.1} parent=43 // pred_check_branch
          %1176 = sbr.rel (%p1174) target = $region48
        $region47: #{tpu_custom_call.1} parent=43 // pred_region
          %s1177 = smul.u32 8, %s27
        $region48: #{tpu_custom_call.1} parent=43 // pred_fallthru
          _
        // Predicated region
        $region49: #{tpu_custom_call.1} parent=43 // pred_check
          %p1178 = pneg %p225
        $region50: #{tpu_custom_call.1} parent=43 // pred_check_branch
          %1180 = sbr.rel (%p1178) target = $region52
        $region51: #{tpu_custom_call.1} parent=43 // pred_region
          %s1181 = smul.u32 8, %s27
          %1183 = vsyncadd %s1170, 0
          %s1184 = smul.addr %s26, 16
          %s1185 = sadd.s32 %s1181, %s1184
          %s1186 = smul.addr %s1185, 8
          %s1187 = scalar_lea.hbm %s7, %s1186
          %s1188 = sshll.u32 %s1173, 4
          %s1189 = int_to_ptr.vmem [resolvable:$true] %s1188
          %s1190 = sshll.u32 %s1187, 4
          %s1191 = int_to_ptr.hbm [resolvable:$true] %s1190
          %1196 = dma.vmem_to_hbm [thread:$0]  %s1189, 2048, %s1191, %s1170, 1024, 1024, 64
        $region52: #{tpu_custom_call.1} parent=43 // pred_fallthru
          _
      $region44: #{tpu_custom_call.1} parent=5 // pred_fallthru
        _
      %p1197 = scmp.le.s32.totalorder 2, %s17
      // Predicated region
      $region53: #{tpu_custom_call.1} parent=5 // pred_check
        %p1198 = pneg %p1197
      $region54: #{tpu_custom_call.1} parent=5 // pred_check_branch
        %1200 = sbr.rel (%p1198) target = $region56
      $region55: #{tpu_custom_call.1} parent=5 // pred_region
        %s1201 = ssub.s32 %s17, 2
        // Predicated region
        $region57: #{tpu_custom_call.1} parent=55 // pred_check
          %p1202 = pneg %p203
        $region58: #{tpu_custom_call.1} parent=55 // pred_check_branch
          %1204 = sbr.rel (%p1202) target = $region60
        $region59: #{tpu_custom_call.1} parent=55 // pred_region
          %s1205 = smul.u32 8, %s29
          %p1206 = scmp.lt.s32.totalorder %s28, 1
          %s1207 = scalar_select %p1206, %s28, 1
          %p1208 = scmp.lt.s32.totalorder %s1205, 7
          %s1209 = scalar_select %p1208, %s1205, 7
          %s1210 = smul.addr %s1207, 8
          %s1211 = sadd.s32 %s1209, %s1210
          %s1212 = smul.addr %s1211, 8
          %s1213 = scalar_lea.vmem %s6, %s1212
        $region60: #{tpu_custom_call.1} parent=55 // pred_fallthru
          _
        // Predicated region
        $region61: #{tpu_custom_call.1} parent=55 // pred_check
          %p1214 = pneg %p231
        $region62: #{tpu_custom_call.1} parent=55 // pred_check_branch
          %1216 = sbr.rel (%p1214) target = $region64
        $region63: #{tpu_custom_call.1} parent=55 // pred_region
          %s1217 = sand.u32 %s216, 1
          %s1218 = scalar_lea.sflag [#allocation5], %s1217
          %s1219 = sand.u32 %s216, 1
          %s1220 = smul.addr %s1219, 128
          %s1221 = scalar_lea.vmem [#allocation4], %s1220
          %1223 = dma.done %s1218, 2048
        $region64: #{tpu_custom_call.1} parent=55 // pred_fallthru
          _
      $region56: #{tpu_custom_call.1} parent=5 // pred_fallthru
        _
    $region6: #{tpu_custom_call.1} parent=1 // loop_footer
      %s21 = sadd.s32 1, %s17
    $region7: #{tpu_custom_call.1} parent=1 // loop_footer_branch
      %16 = sbr.rel target = $region3
    $region8: #{tpu_custom_call.1} parent=1 // loop_exit
      _
    %1224 = vsyncpa [#allocation5], 1
    %s1225 = scalar_lea.sflag [#allocation5], 1
    %1226 = vsyncpa %s1225, 1

</llo_original>
